<compile_context>
chip_gen: v7x
topology: tpu7x:2x2x1
jax: 0.10.0
libtpu: 0.0.40
codegen_flags: <defaults>
</compile_context>

<pallas_src>
import jax
import jax.numpy as jnp
from jax.experimental import pallas as pl
from jax.experimental.pallas import tpu as pltpu

_EPS = 1e-5


def _conv3x3_banded(src_pad_ref, t_ref, N, H):
    """3x3 'same' conv on a lane-dense activation as 3 accumulating MXU matmuls.

    src_pad_ref : VMEM ref (N, H+2, W*Ci) bf16; rows 0 and H+1 of every image are zero halo.
    t_ref       : VMEM ref (3, W*Ci, W*Co) bf16 block-Toeplitz weights (dx taps + W padding
                  folded into the matrix).
    returns     : (N*H, W*Co) f32 accumulator.
    """
    w_ci = src_pad_ref.shape[-1]
    w_co = t_ref.shape[-1]
    acc = jnp.zeros((N * H, w_co), jnp.float32)
    for dy in range(3):
        lhs = src_pad_ref[:, dy:dy + H, :].reshape(N * H, w_ci)
        acc = acc + jnp.dot(lhs, t_ref[dy], preferred_element_type=jnp.float32)
    return acc


def _bn_relu(acc, gamma, beta, gsum, gbcast):
    """Training-mode BatchNorm2d (biased batch stats over N*H*W) + ReLU on a lane-dense slab.

    acc    : (M, W*Co) f32
    gamma  : (1, Co) f32,  beta : (1, Co) f32
    gsum   : (W*Co, Co) f32 0/1 matrix (gathers the W lane-groups of each channel)
    gbcast : (Co, W*Co) f32 0/1 matrix (re-broadcasts per-channel values to W*Co lanes)
    """
    co = gamma.shape[-1]
    inv_n = 1.0 / float(acc.shape[0] * (acc.shape[1] // co))
    # Both moments from one traversal of acc (sum + sum-of-squares), then tiny per-channel math.
    s_row = jnp.sum(acc, axis=0, keepdims=True)                       # (1, W*Co)
    ss_row = jnp.sum(acc * acc, axis=0, keepdims=True)                # (1, W*Co)
    mean = jnp.dot(s_row, gsum, preferred_element_type=jnp.float32) * inv_n    # (1, Co)
    ex2 = jnp.dot(ss_row, gsum, preferred_element_type=jnp.float32) * inv_n    # (1, Co)
    # NOTE: E[x^2]-E[x]^2 in f32 with a clamp; move to two-pass/Welford before scaling n up.
    var = jnp.maximum(ex2 - mean * mean, 0.0)
    scale_c = jax.lax.rsqrt(var + _EPS) * gamma                       # (1, Co)
    shift_c = beta - mean * scale_c                                   # (1, Co)
    scale = jnp.dot(scale_c, gbcast, preferred_element_type=jnp.float32)   # (1, W*Co)
    shift = jnp.dot(shift_c, gbcast, preferred_element_type=jnp.float32)   # (1, W*Co)
    return jnp.maximum(acc * scale + shift, 0.0)


def double_conv_kernel(x_ref, t1_ref, g1_ref, b1_ref, t2_ref, g2_ref, b2_ref,
                       gsum_ref, gbcast_ref, out_ref, xpad_s, y1pad_s):
    N, H, w_ci = x_ref.shape          # x_ref: (N, H, W*Cin) bf16, lane-dense
    w_co = out_ref.shape[-1]          # out_ref: (N*H, W*Cout) f32, lane-dense

    gsum = gsum_ref[...]
    gbcast = gbcast_ref[...]

    # ---- stage input with a 1-row halo (halo-only zeroing, lane-dense stores) ----
    zero_i = jnp.zeros((N, 1, w_ci), xpad_s.dtype)
    xpad_s[:, 0:1, :] = zero_i
    xpad_s[:, H + 1:H + 2, :] = zero_i
    xpad_s[:, 1:H + 1, :] = x_ref[...]

    # ---- conv1 + BN1 + ReLU ----
    acc1 = _conv3x3_banded(xpad_s, t1_ref, N, H)
    y1 = _bn_relu(acc1, g1_ref[...], b1_ref[...], gsum, gbcast)      # (N*H, W*Co) f32

    # ---- stage intermediate (bf16, conv2's MXU operand) with a 1-row halo ----
    zero_o = jnp.zeros((N, 1, w_co), y1pad_s.dtype)
    y1pad_s[:, 0:1, :] = zero_o
    y1pad_s[:, H + 1:H + 2, :] = zero_o
    y1pad_s[:, 1:H + 1, :] = y1.reshape(N, H, w_co).astype(y1pad_s.dtype)

    # ---- conv2 + BN2 + ReLU ----
    acc2 = _conv3x3_banded(y1pad_s, t2_ref, N, H)
    out_ref[...] = _bn_relu(acc2, g2_ref[...], b2_ref[...], gsum, gbcast)


def _banded_weights(w_oihw, width):
    """PyTorch OIHW conv weight -> (3, W*Ci, W*Co) bf16 block-Toeplitz matrices.

    T[dy][ws*Ci + ci, wo*Co + co] = w_hwio[dy, dx, ci, co] where ws = wo + dx - 1 (dx in 0..2),
    and 0 otherwise — i.e. the dx taps plus the W-direction 'same' zero padding live in T.
    """
    w_hwio = jnp.transpose(w_oihw, (2, 3, 1, 0)).astype(jnp.float32)  # OIHW -> HWIO
    kh, kw = w_hwio.shape[0], w_hwio.shape[1]
    t = jnp.stack([
        sum(jnp.kron(jnp.eye(width, width, k=1 - dx, dtype=jnp.float32), w_hwio[dy, dx])
            for dx in range(kw))
        for dy in range(kh)
    ])
    return t.astype(jnp.bfloat16)


def _channel_maps(width, cout):
    """0/1 matrices mapping lane-dense (W*Co) lanes <-> channels for the BN statistics."""
    eye = jnp.eye(cout, dtype=jnp.float32)
    gsum = jnp.tile(eye, (width, 1))          # (W*Co, Co): gsum[w*Co+c, c] = 1
    return gsum, gsum.T                       # gather, re-broadcast


def double_conv(x_nchw, w1_oihw, g1, b1, w2_oihw, g2, b2):
    """x_nchw: (N, Cin, H, W); w*_oihw: PyTorch-native (Cout, Cin/Cout, 3, 3) conv weights."""
    N, Cin, H, W = x_nchw.shape
    Cout = w1_oihw.shape[0]

    # NCHW -> NHWC -> lane-dense (N, H, W*Cin); bf16 = MXU operand dtype (halves the input DMA).
    x = jnp.transpose(x_nchw, (0, 2, 3, 1)).reshape(N, H, W * Cin).astype(jnp.bfloat16)

    t1 = _banded_weights(w1_oihw, W)                                  # (3, W*Cin,  W*Cout)
    t2 = _banded_weights(w2_oihw, W)                                  # (3, W*Cout, W*Cout)
    gsum, gbcast = _channel_maps(W, Cout)

    operands = (
        x, t1,
        g1.reshape(1, Cout).astype(jnp.float32), b1.reshape(1, Cout).astype(jnp.float32),
        t2,
        g2.reshape(1, Cout).astype(jnp.float32), b2.reshape(1, Cout).astype(jnp.float32),
        gsum, gbcast,
    )

    # VMEM budget from the actual buffers (inputs + output + scratches), with headroom.
    total_bytes = N * H * W * Cout * 4                                # output (f32)
    total_bytes += (N * (H + 2) * W * Cin + N * (H + 2) * W * Cout) * 2   # bf16 scratches
    for a in operands:
        total_bytes += a.size * a.dtype.itemsize
    vmem_limit = int(min(max(4 * total_bytes, 16 << 20), 64 << 20))

    out_flat = pl.pallas_call(
        double_conv_kernel,
        out_shape=jax.ShapeDtypeStruct((N * H, W * Cout), jnp.float32),
        in_specs=[pl.BlockSpec(memory_space=pltpu.MemorySpace.VMEM)] * len(operands),
        out_specs=pl.BlockSpec(memory_space=pltpu.MemorySpace.VMEM),
        scratch_shapes=[
            pltpu.VMEM((N, H + 2, W * Cin), jnp.bfloat16),            # haloed input (bf16)
            pltpu.VMEM((N, H + 2, W * Cout), jnp.bfloat16),           # haloed intermediate (bf16)
        ],
        compiler_params=pltpu.CompilerParams(vmem_limit_bytes=vmem_limit),
    )(*operands)

    # Layout plumbing back to NCHW (wrapper-side reshape/transpose only, no compute).
    return jnp.transpose(out_flat.reshape(N, H, W, Cout), (0, 3, 1, 2))


def double_conv_reference(x_nchw, w1_oihw, g1, b1, w2_oihw, g2, b2):
    """Pure-JAX f32 reference with identical semantics (for verification)."""
    x = jnp.transpose(x_nchw, (0, 2, 3, 1)).astype(jnp.float32)

    def conv(y, w_oihw):
        w = jnp.transpose(w_oihw, (2, 3, 1, 0))                       # OIHW -> HWIO
        return jax.lax.conv_general_dilated(
            y, w, (1, 1), "SAME",
            dimension_numbers=("NHWC", "HWIO", "NHWC"),
            precision=jax.lax.Precision.HIGHEST)

    def bn_relu(y, g, b):
        m = jnp.mean(y, axis=(0, 1, 2), keepdims=True)
        v = jnp.mean((y - m) ** 2, axis=(0, 1, 2), keepdims=True)
        return jnp.maximum((y - m) * jax.lax.rsqrt(v + _EPS) * g + b, 0.0)

    y = bn_relu(conv(x, w1_oihw), g1, b1)
    y = bn_relu(conv(y, w2_oihw), g2, b2)
    return jnp.transpose(y, (0, 3, 1, 2))


if __name__ == "__main__":
    # Small shapes consistent with DoubleConv(in_channels=4, out_channels=8)
    N, Cin, Cout, H, W = 2, 4, 8, 16, 16

    key = jax.random.PRNGKey(0)
    kx, kw1, kw2, kg1, kb1, kg2, kb2 = jax.random.split(key, 7)

    x = jax.random.normal(kx, (N, Cin, H, W), jnp.float32)
    # Conv weights in PyTorch-native OIHW layout (transposed to HWIO inside the wrappers).
    w1 = 0.1 * jax.random.normal(kw1, (Cout, Cin, 3, 3), jnp.float32)
    w2 = 0.1 * jax.random.normal(kw2, (Cout, Cout, 3, 3), jnp.float32)
    # BatchNorm affine params (deterministic, non-trivial)
    g1 = 1.0 + 0.1 * jax.random.normal(kg1, (Cout,), jnp.float32)
    b1 = 0.1 * jax.random.normal(kb1, (Cout,), jnp.float32)
    g2 = 1.0 + 0.1 * jax.random.normal(kg2, (Cout,), jnp.float32)
    b2 = 0.1 * jax.random.normal(kb2, (Cout,), jnp.float32)

    out = jax.block_until_ready(double_conv(x, w1, g1, b1, w2, g2, b2))
    ref = jax.block_until_ready(double_conv_reference(x, w1, g1, b1, w2, g2, b2))

    assert out.shape == (N, Cout, H, W)
    assert jnp.allclose(out, ref, atol=2e-2, rtol=2e-2), "mismatch vs JAX reference"

    print("KERNEL_OK")
</pallas_src>

<mosaic_0001>
module attributes {stable_mosaic.version = 11 : i64} {
  func.func @double_conv_kernel(%arg0: memref<2x16x64xbf16, #tpu.memory_space<vmem>>, %arg1: memref<3x64x128xbf16, #tpu.memory_space<vmem>>, %arg2: memref<1x8xf32, #tpu.memory_space<vmem>>, %arg3: memref<1x8xf32, #tpu.memory_space<vmem>>, %arg4: memref<3x128x128xbf16, #tpu.memory_space<vmem>>, %arg5: memref<1x8xf32, #tpu.memory_space<vmem>>, %arg6: memref<1x8xf32, #tpu.memory_space<vmem>>, %arg7: memref<128x8xf32, #tpu.memory_space<vmem>>, %arg8: memref<8x128xf32, #tpu.memory_space<vmem>>, %arg9: memref<32x128xf32, #tpu.memory_space<vmem>>, %arg10: memref<2x18x64xbf16, #tpu.memory_space<vmem>>, %arg11: memref<2x18x128xbf16, #tpu.memory_space<vmem>>) attributes {dimension_semantics = [], scalar_prefetch = 0 : i64, scratch_operands = 2 : i64, tpu.core_type = #tpu.core_type<tc>} {
    %c0 = arith.constant 0 : index
    %c0_0 = arith.constant 0 : index
    %0 = vector.load %arg7[%c0, %c0_0] : memref<128x8xf32, #tpu.memory_space<vmem>>, vector<128x8xf32>
    %c0_1 = arith.constant 0 : index
    %c0_2 = arith.constant 0 : index
    %1 = vector.load %arg8[%c0_1, %c0_2] : memref<8x128xf32, #tpu.memory_space<vmem>>, vector<8x128xf32>
    %cst = arith.constant 0.000000e+00 : bf16
    %2 = vector.broadcast %cst : bf16 to vector<2x1x64xbf16>
    %c0_3 = arith.constant 0 : index
    %c0_4 = arith.constant 0 : index
    %c0_5 = arith.constant 0 : index
    %3 = vector.load %arg10[%c0_3, %c0_4, %c0_5] : memref<2x18x64xbf16, #tpu.memory_space<vmem>>, vector<2x1x64xbf16>
    tpu.vector_store %arg10[%c0_3, %c0_4, %c0_5], %2 {strides = array<i32>} : memref<2x18x64xbf16, #tpu.memory_space<vmem>>, vector<2x1x64xbf16>,
    %c0_6 = arith.constant 0 : index
    %c17 = arith.constant 17 : index
    %c0_7 = arith.constant 0 : index
    %4 = vector.load %arg10[%c0_6, %c17, %c0_7] : memref<2x18x64xbf16, #tpu.memory_space<vmem>>, vector<2x1x64xbf16>
    tpu.vector_store %arg10[%c0_6, %c17, %c0_7], %2 {strides = array<i32>} : memref<2x18x64xbf16, #tpu.memory_space<vmem>>, vector<2x1x64xbf16>,
    %c0_8 = arith.constant 0 : index
    %c0_9 = arith.constant 0 : index
    %c0_10 = arith.constant 0 : index
    %5 = vector.load %arg0[%c0_8, %c0_9, %c0_10] : memref<2x16x64xbf16, #tpu.memory_space<vmem>>, vector<2x16x64xbf16>
    %c0_11 = arith.constant 0 : index
    %c1 = arith.constant 1 : index
    %c0_12 = arith.constant 0 : index
    %6 = vector.load %arg10[%c0_11, %c1, %c0_12] : memref<2x18x64xbf16, #tpu.memory_space<vmem>>, vector<2x16x64xbf16>
    tpu.vector_store %arg10[%c0_11, %c1, %c0_12], %5 {strides = array<i32>} : memref<2x18x64xbf16, #tpu.memory_space<vmem>>, vector<2x16x64xbf16>,
    %cst_13 = arith.constant 0.000000e+00 : f32
    %7 = vector.broadcast %cst_13 : f32 to vector<32x128xf32>
    %c0_14 = arith.constant 0 : index
    %c0_15 = arith.constant 0 : index
    %c0_16 = arith.constant 0 : index
    %8 = vector.load %arg10[%c0_14, %c0_15, %c0_16] : memref<2x18x64xbf16, #tpu.memory_space<vmem>>, vector<2x16x64xbf16>
    %9 = vector.shape_cast %8 : vector<2x16x64xbf16> to vector<32x64xbf16>
    %c0_17 = arith.constant 0 : index
    %c0_18 = arith.constant 0 : index
    %c0_19 = arith.constant 0 : index
    %10 = vector.load %arg1[%c0_17, %c0_18, %c0_19] : memref<3x64x128xbf16, #tpu.memory_space<vmem>>, vector<1x64x128xbf16>
    %11 = vector.shape_cast %10 : vector<1x64x128xbf16> to vector<64x128xbf16>
    %cst_20 = arith.constant dense<0.000000e+00> : vector<32x128xf32>
    %12 = tpu.matmul %9, %11, %cst_20 {dimension_numbers = #tpu.dot_dimension_numbers<[1], [0], [0], [1], [0, 0, 1, 1], [], []>} : vector<32x64xbf16>, vector<64x128xbf16>, vector<32x128xf32> -> vector<32x128xf32>
    %13 = arith.addf %7, %12 : vector<32x128xf32>
    %c0_21 = arith.constant 0 : index
    %c1_22 = arith.constant 1 : index
    %c0_23 = arith.constant 0 : index
    %14 = vector.load %arg10[%c0_21, %c1_22, %c0_23] : memref<2x18x64xbf16, #tpu.memory_space<vmem>>, vector<2x16x64xbf16>
    %15 = vector.shape_cast %14 : vector<2x16x64xbf16> to vector<32x64xbf16>
    %c1_24 = arith.constant 1 : index
    %c0_25 = arith.constant 0 : index
    %c0_26 = arith.constant 0 : index
    %16 = vector.load %arg1[%c1_24, %c0_25, %c0_26] : memref<3x64x128xbf16, #tpu.memory_space<vmem>>, vector<1x64x128xbf16>
    %17 = vector.shape_cast %16 : vector<1x64x128xbf16> to vector<64x128xbf16>
    %cst_27 = arith.constant dense<0.000000e+00> : vector<32x128xf32>
    %18 = tpu.matmul %15, %17, %cst_27 {dimension_numbers = #tpu.dot_dimension_numbers<[1], [0], [0], [1], [0, 0, 1, 1], [], []>} : vector<32x64xbf16>, vector<64x128xbf16>, vector<32x128xf32> -> vector<32x128xf32>
    %19 = arith.addf %13, %18 : vector<32x128xf32>
    %c0_28 = arith.constant 0 : index
    %c2 = arith.constant 2 : index
    %c0_29 = arith.constant 0 : index
    %20 = vector.load %arg10[%c0_28, %c2, %c0_29] : memref<2x18x64xbf16, #tpu.memory_space<vmem>>, vector<2x16x64xbf16>
    %21 = vector.shape_cast %20 : vector<2x16x64xbf16> to vector<32x64xbf16>
    %c2_30 = arith.constant 2 : index
    %c0_31 = arith.constant 0 : index
    %c0_32 = arith.constant 0 : index
    %22 = vector.load %arg1[%c2_30, %c0_31, %c0_32] : memref<3x64x128xbf16, #tpu.memory_space<vmem>>, vector<1x64x128xbf16>
    %23 = vector.shape_cast %22 : vector<1x64x128xbf16> to vector<64x128xbf16>
    %cst_33 = arith.constant dense<0.000000e+00> : vector<32x128xf32>
    %24 = tpu.matmul %21, %23, %cst_33 {dimension_numbers = #tpu.dot_dimension_numbers<[1], [0], [0], [1], [0, 0, 1, 1], [], []>} : vector<32x64xbf16>, vector<64x128xbf16>, vector<32x128xf32> -> vector<32x128xf32>
    %25 = arith.addf %19, %24 : vector<32x128xf32>
    %c0_34 = arith.constant 0 : index
    %c0_35 = arith.constant 0 : index
    %26 = vector.load %arg2[%c0_34, %c0_35] : memref<1x8xf32, #tpu.memory_space<vmem>>, vector<1x8xf32>
    %c0_36 = arith.constant 0 : index
    %c0_37 = arith.constant 0 : index
    %27 = vector.load %arg3[%c0_36, %c0_37] : memref<1x8xf32, #tpu.memory_space<vmem>>, vector<1x8xf32>
    %cst_38 = arith.constant dense<0.000000e+00> : vector<128xf32>
    %28 = vector.multi_reduction <add>, %25, %cst_38 [0] : vector<32x128xf32> to vector<128xf32>
    %29 = vector.shape_cast %28 : vector<128xf32> to vector<1x128xf32>
    %30 = arith.mulf %25, %25 : vector<32x128xf32>
    %cst_39 = arith.constant dense<0.000000e+00> : vector<128xf32>
    %31 = vector.multi_reduction <add>, %30, %cst_39 [0] : vector<32x128xf32> to vector<128xf32>
    %32 = vector.shape_cast %31 : vector<128xf32> to vector<1x128xf32>
    %cst_40 = arith.constant dense<0.000000e+00> : vector<1x8xf32>
    %33 = tpu.matmul %29, %0, %cst_40 {dimension_numbers = #tpu.dot_dimension_numbers<[1], [0], [0], [1], [0, 0, 1, 1], [], []>} : vector<1x128xf32>, vector<128x8xf32>, vector<1x8xf32> -> vector<1x8xf32>
    %cst_41 = arith.constant 0.001953125 : f32
    %34 = vector.broadcast %cst_41 : f32 to vector<1x8xf32>
    %35 = arith.mulf %33, %34 : vector<1x8xf32>
    %cst_42 = arith.constant dense<0.000000e+00> : vector<1x8xf32>
    %36 = tpu.matmul %32, %0, %cst_42 {dimension_numbers = #tpu.dot_dimension_numbers<[1], [0], [0], [1], [0, 0, 1, 1], [], []>} : vector<1x128xf32>, vector<128x8xf32>, vector<1x8xf32> -> vector<1x8xf32>
    %cst_43 = arith.constant 0.001953125 : f32
    %37 = vector.broadcast %cst_43 : f32 to vector<1x8xf32>
    %38 = arith.mulf %36, %37 : vector<1x8xf32>
    %39 = arith.mulf %35, %35 : vector<1x8xf32>
    %40 = arith.subf %38, %39 : vector<1x8xf32>
    %cst_44 = arith.constant 0.000000e+00 : f32
    %41 = vector.broadcast %cst_44 : f32 to vector<1x8xf32>
    %42 = arith.maximumf %40, %41 : vector<1x8xf32>
    %cst_45 = arith.constant 9.99999974E-6 : f32
    %43 = vector.broadcast %cst_45 : f32 to vector<1x8xf32>
    %44 = arith.addf %42, %43 : vector<1x8xf32>
    %45 = math.rsqrt %44 : vector<1x8xf32>
    %46 = arith.mulf %45, %26 : vector<1x8xf32>
    %47 = arith.mulf %35, %46 : vector<1x8xf32>
    %48 = arith.subf %27, %47 : vector<1x8xf32>
    %cst_46 = arith.constant dense<0.000000e+00> : vector<1x128xf32>
    %49 = tpu.matmul %46, %1, %cst_46 {dimension_numbers = #tpu.dot_dimension_numbers<[1], [0], [0], [1], [0, 0, 1, 1], [], []>} : vector<1x8xf32>, vector<8x128xf32>, vector<1x128xf32> -> vector<1x128xf32>
    %cst_47 = arith.constant dense<0.000000e+00> : vector<1x128xf32>
    %50 = tpu.matmul %48, %1, %cst_47 {dimension_numbers = #tpu.dot_dimension_numbers<[1], [0], [0], [1], [0, 0, 1, 1], [], []>} : vector<1x8xf32>, vector<8x128xf32>, vector<1x128xf32> -> vector<1x128xf32>
    %51 = vector.broadcast %49 : vector<1x128xf32> to vector<32x128xf32>
    %52 = arith.mulf %25, %51 : vector<32x128xf32>
    %53 = vector.broadcast %50 : vector<1x128xf32> to vector<32x128xf32>
    %54 = arith.addf %52, %53 : vector<32x128xf32>
    %cst_48 = arith.constant 0.000000e+00 : f32
    %55 = vector.broadcast %cst_48 : f32 to vector<32x128xf32>
    %56 = arith.maximumf %54, %55 : vector<32x128xf32>
    %cst_49 = arith.constant 0.000000e+00 : bf16
    %57 = vector.broadcast %cst_49 : bf16 to vector<2x1x128xbf16>
    %c0_50 = arith.constant 0 : index
    %c0_51 = arith.constant 0 : index
    %c0_52 = arith.constant 0 : index
    %58 = vector.load %arg11[%c0_50, %c0_51, %c0_52] : memref<2x18x128xbf16, #tpu.memory_space<vmem>>, vector<2x1x128xbf16>
    tpu.vector_store %arg11[%c0_50, %c0_51, %c0_52], %57 {strides = array<i32>} : memref<2x18x128xbf16, #tpu.memory_space<vmem>>, vector<2x1x128xbf16>,
    %c0_53 = arith.constant 0 : index
    %c17_54 = arith.constant 17 : index
    %c0_55 = arith.constant 0 : index
    %59 = vector.load %arg11[%c0_53, %c17_54, %c0_55] : memref<2x18x128xbf16, #tpu.memory_space<vmem>>, vector<2x1x128xbf16>
    tpu.vector_store %arg11[%c0_53, %c17_54, %c0_55], %57 {strides = array<i32>} : memref<2x18x128xbf16, #tpu.memory_space<vmem>>, vector<2x1x128xbf16>,
    %60 = vector.shape_cast %56 : vector<32x128xf32> to vector<2x16x128xf32>
    %61 = arith.truncf %60 : vector<2x16x128xf32> to vector<2x16x128xbf16>
    %c0_56 = arith.constant 0 : index
    %c1_57 = arith.constant 1 : index
    %c0_58 = arith.constant 0 : index
    %62 = vector.load %arg11[%c0_56, %c1_57, %c0_58] : memref<2x18x128xbf16, #tpu.memory_space<vmem>>, vector<2x16x128xbf16>
    tpu.vector_store %arg11[%c0_56, %c1_57, %c0_58], %61 {strides = array<i32>} : memref<2x18x128xbf16, #tpu.memory_space<vmem>>, vector<2x16x128xbf16>,
    %cst_59 = arith.constant 0.000000e+00 : f32
    %63 = vector.broadcast %cst_59 : f32 to vector<32x128xf32>
    %c0_60 = arith.constant 0 : index
    %c0_61 = arith.constant 0 : index
    %c0_62 = arith.constant 0 : index
    %64 = vector.load %arg11[%c0_60, %c0_61, %c0_62] : memref<2x18x128xbf16, #tpu.memory_space<vmem>>, vector<2x16x128xbf16>
    %65 = vector.shape_cast %64 : vector<2x16x128xbf16> to vector<32x128xbf16>
    %c0_63 = arith.constant 0 : index
    %c0_64 = arith.constant 0 : index
    %c0_65 = arith.constant 0 : index
    %66 = vector.load %arg4[%c0_63, %c0_64, %c0_65] : memref<3x128x128xbf16, #tpu.memory_space<vmem>>, vector<1x128x128xbf16>
    %67 = vector.shape_cast %66 : vector<1x128x128xbf16> to vector<128x128xbf16>
    %cst_66 = arith.constant dense<0.000000e+00> : vector<32x128xf32>
    %68 = tpu.matmul %65, %67, %cst_66 {dimension_numbers = #tpu.dot_dimension_numbers<[1], [0], [0], [1], [0, 0, 1, 1], [], []>} : vector<32x128xbf16>, vector<128x128xbf16>, vector<32x128xf32> -> vector<32x128xf32>
    %69 = arith.addf %63, %68 : vector<32x128xf32>
    %c0_67 = arith.constant 0 : index
    %c1_68 = arith.constant 1 : index
    %c0_69 = arith.constant 0 : index
    %70 = vector.load %arg11[%c0_67, %c1_68, %c0_69] : memref<2x18x128xbf16, #tpu.memory_space<vmem>>, vector<2x16x128xbf16>
    %71 = vector.shape_cast %70 : vector<2x16x128xbf16> to vector<32x128xbf16>
    %c1_70 = arith.constant 1 : index
    %c0_71 = arith.constant 0 : index
    %c0_72 = arith.constant 0 : index
    %72 = vector.load %arg4[%c1_70, %c0_71, %c0_72] : memref<3x128x128xbf16, #tpu.memory_space<vmem>>, vector<1x128x128xbf16>
    %73 = vector.shape_cast %72 : vector<1x128x128xbf16> to vector<128x128xbf16>
    %cst_73 = arith.constant dense<0.000000e+00> : vector<32x128xf32>
    %74 = tpu.matmul %71, %73, %cst_73 {dimension_numbers = #tpu.dot_dimension_numbers<[1], [0], [0], [1], [0, 0, 1, 1], [], []>} : vector<32x128xbf16>, vector<128x128xbf16>, vector<32x128xf32> -> vector<32x128xf32>
    %75 = arith.addf %69, %74 : vector<32x128xf32>
    %c0_74 = arith.constant 0 : index
    %c2_75 = arith.constant 2 : index
    %c0_76 = arith.constant 0 : index
    %76 = vector.load %arg11[%c0_74, %c2_75, %c0_76] : memref<2x18x128xbf16, #tpu.memory_space<vmem>>, vector<2x16x128xbf16>
    %77 = vector.shape_cast %76 : vector<2x16x128xbf16> to vector<32x128xbf16>
    %c2_77 = arith.constant 2 : index
    %c0_78 = arith.constant 0 : index
    %c0_79 = arith.constant 0 : index
    %78 = vector.load %arg4[%c2_77, %c0_78, %c0_79] : memref<3x128x128xbf16, #tpu.memory_space<vmem>>, vector<1x128x128xbf16>
    %79 = vector.shape_cast %78 : vector<1x128x128xbf16> to vector<128x128xbf16>
    %cst_80 = arith.constant dense<0.000000e+00> : vector<32x128xf32>
    %80 = tpu.matmul %77, %79, %cst_80 {dimension_numbers = #tpu.dot_dimension_numbers<[1], [0], [0], [1], [0, 0, 1, 1], [], []>} : vector<32x128xbf16>, vector<128x128xbf16>, vector<32x128xf32> -> vector<32x128xf32>
    %81 = arith.addf %75, %80 : vector<32x128xf32>
    %c0_81 = arith.constant 0 : index
    %c0_82 = arith.constant 0 : index
    %82 = vector.load %arg5[%c0_81, %c0_82] : memref<1x8xf32, #tpu.memory_space<vmem>>, vector<1x8xf32>
    %c0_83 = arith.constant 0 : index
    %c0_84 = arith.constant 0 : index
    %83 = vector.load %arg6[%c0_83, %c0_84] : memref<1x8xf32, #tpu.memory_space<vmem>>, vector<1x8xf32>
    %cst_85 = arith.constant dense<0.000000e+00> : vector<128xf32>
    %84 = vector.multi_reduction <add>, %81, %cst_85 [0] : vector<32x128xf32> to vector<128xf32>
    %85 = vector.shape_cast %84 : vector<128xf32> to vector<1x128xf32>
    %86 = arith.mulf %81, %81 : vector<32x128xf32>
    %cst_86 = arith.constant dense<0.000000e+00> : vector<128xf32>
    %87 = vector.multi_reduction <add>, %86, %cst_86 [0] : vector<32x128xf32> to vector<128xf32>
    %88 = vector.shape_cast %87 : vector<128xf32> to vector<1x128xf32>
    %cst_87 = arith.constant dense<0.000000e+00> : vector<1x8xf32>
    %89 = tpu.matmul %85, %0, %cst_87 {dimension_numbers = #tpu.dot_dimension_numbers<[1], [0], [0], [1], [0, 0, 1, 1], [], []>} : vector<1x128xf32>, vector<128x8xf32>, vector<1x8xf32> -> vector<1x8xf32>
    %cst_88 = arith.constant 0.001953125 : f32
    %90 = vector.broadcast %cst_88 : f32 to vector<1x8xf32>
    %91 = arith.mulf %89, %90 : vector<1x8xf32>
    %cst_89 = arith.constant dense<0.000000e+00> : vector<1x8xf32>
    %92 = tpu.matmul %88, %0, %cst_89 {dimension_numbers = #tpu.dot_dimension_numbers<[1], [0], [0], [1], [0, 0, 1, 1], [], []>} : vector<1x128xf32>, vector<128x8xf32>, vector<1x8xf32> -> vector<1x8xf32>
    %cst_90 = arith.constant 0.001953125 : f32
    %93 = vector.broadcast %cst_90 : f32 to vector<1x8xf32>
    %94 = arith.mulf %92, %93 : vector<1x8xf32>
    %95 = arith.mulf %91, %91 : vector<1x8xf32>
    %96 = arith.subf %94, %95 : vector<1x8xf32>
    %cst_91 = arith.constant 0.000000e+00 : f32
    %97 = vector.broadcast %cst_91 : f32 to vector<1x8xf32>
    %98 = arith.maximumf %96, %97 : vector<1x8xf32>
    %cst_92 = arith.constant 9.99999974E-6 : f32
    %99 = vector.broadcast %cst_92 : f32 to vector<1x8xf32>
    %100 = arith.addf %98, %99 : vector<1x8xf32>
    %101 = math.rsqrt %100 : vector<1x8xf32>
    %102 = arith.mulf %101, %82 : vector<1x8xf32>
    %103 = arith.mulf %91, %102 : vector<1x8xf32>
    %104 = arith.subf %83, %103 : vector<1x8xf32>
    %cst_93 = arith.constant dense<0.000000e+00> : vector<1x128xf32>
    %105 = tpu.matmul %102, %1, %cst_93 {dimension_numbers = #tpu.dot_dimension_numbers<[1], [0], [0], [1], [0, 0, 1, 1], [], []>} : vector<1x8xf32>, vector<8x128xf32>, vector<1x128xf32> -> vector<1x128xf32>
    %cst_94 = arith.constant dense<0.000000e+00> : vector<1x128xf32>
    %106 = tpu.matmul %104, %1, %cst_94 {dimension_numbers = #tpu.dot_dimension_numbers<[1], [0], [0], [1], [0, 0, 1, 1], [], []>} : vector<1x8xf32>, vector<8x128xf32>, vector<1x128xf32> -> vector<1x128xf32>
    %107 = vector.broadcast %105 : vector<1x128xf32> to vector<32x128xf32>
    %108 = arith.mulf %81, %107 : vector<32x128xf32>
    %109 = vector.broadcast %106 : vector<1x128xf32> to vector<32x128xf32>
    %110 = arith.addf %108, %109 : vector<32x128xf32>
    %cst_95 = arith.constant 0.000000e+00 : f32
    %111 = vector.broadcast %cst_95 : f32 to vector<32x128xf32>
    %112 = arith.maximumf %110, %111 : vector<32x128xf32>
    %c0_96 = arith.constant 0 : index
    %c0_97 = arith.constant 0 : index
    %113 = vector.load %arg9[%c0_96, %c0_97] : memref<32x128xf32, #tpu.memory_space<vmem>>, vector<32x128xf32>
    tpu.vector_store %arg9[%c0_96, %c0_97], %112 {strides = array<i32>} : memref<32x128xf32, #tpu.memory_space<vmem>>, vector<32x128xf32>,
    return
  }
}

</mosaic_0001>

<llo_original>
// kernel: tpu_custom_call.1
$region0: #{tpu_custom_call.1}
  #allocation0 [shape = 'u32[]', space=smem, size = 0x4, offset = 0x4, fixed_abs, tag = 'smem constant byte address 0x4 - core index']
  #allocation1 [shape = 'u32[144,128]{1,0:T(1,128)}', space=vmem, size = 0x12000, scoped, tag = 'internal scratch']
  #allocation2 [shape = 'bf16[2,18,64]{2,1,0:T(8,128)(2,1)}', space=vmem, size = 0x3000, scoped, tag = 'scratch operand']
  #allocation3 [shape = 'bf16[2,18,128]{2,1,0:T(8,128)(2,1)}', space=vmem, size = 0x3000, scoped, tag = 'scratch operand']
  %s0 = inlined_call_operand.vmem [shape: bf16[2,16,64], index: 0, kind: input, shape index: {}]
  %s1 = inlined_call_operand.vmem [shape: bf16[3,64,128], index: 1, kind: input, shape index: {}]
  %s2 = inlined_call_operand.vmem [shape: f32[1,8], index: 2, kind: input, shape index: {}]
  %s3 = inlined_call_operand.vmem [shape: f32[1,8], index: 3, kind: input, shape index: {}]
  %s4 = inlined_call_operand.hbm [shape: bf16[3,128,128], index: 4, kind: input, shape index: {}]
  %s5 = inlined_call_operand.vmem [shape: f32[1,8], index: 5, kind: input, shape index: {}]
  %s6 = inlined_call_operand.vmem [shape: f32[1,8], index: 6, kind: input, shape index: {}]
  %s7 = inlined_call_operand.vmem [shape: f32[128,8], index: 7, kind: input, shape index: {}]
  %s8 = inlined_call_operand.vmem [shape: f32[8,128], index: 8, kind: input, shape index: {}]
  %s9 = inlined_call_operand.hbm [shape: f32[32,128], index: 9, kind: output, shape index: {}]
  %s10 = sld [smem:[#allocation0]]
  $region50: #{tpu_custom_call.1} parent=0
    _
  %s12 = ssub.s32 1, %s10
  %s13 = scalar_select 0, %s12, %s10
  $region1: #{tpu_custom_call.1} parent=0
    #allocation4 [shape = 'u8[98304]{0}', space=vmem, size = 0x18000, scoped, tag = 'input window, operand 4, single buffered']
    #allocation5 [shape = 's32[1]{0}', space=sflag, size = 0x4, scoped, tag = 'scoped memory for tpu_custom_call.1']
    #allocation6 [shape = 's32[1]{0}', space=sflag, size = 0x4, scoped, tag = 'scoped memory for tpu_custom_call.1']
    #allocation7 [shape = 'u8[16384]{0}', space=vmem, size = 0x4000, scoped, tag = 'output window, operand 0, single buffered']
    %14 = vsyncpa [#allocation5], 0
    %15 = vsyncpa [#allocation6], 0
    // Predicated region
    $region2: #{tpu_custom_call.1} parent=1 // pred_check
      _
    $region3: #{tpu_custom_call.1} parent=1 // pred_check_branch
      %17 = sbr.rel (0) target = $region5
    $region4: #{tpu_custom_call.1} parent=1 // pred_region
      _
    $region5: #{tpu_custom_call.1} parent=1 // pred_fallthru
      _
    // Predicated region
    $region6: #{tpu_custom_call.1} parent=1 // pred_check
      _
    $region7: #{tpu_custom_call.1} parent=1 // pred_check_branch
      %19 = sbr.rel (0) target = $region9
    $region8: #{tpu_custom_call.1} parent=1 // pred_region
      _
    $region9: #{tpu_custom_call.1} parent=1 // pred_fallthru
      _
    // Predicated region
    $region10: #{tpu_custom_call.1} parent=1 // pred_check
      _
    $region11: #{tpu_custom_call.1} parent=1 // pred_check_branch
      %21 = sbr.rel (0) target = $region13
    $region12: #{tpu_custom_call.1} parent=1 // pred_region
      _
    $region13: #{tpu_custom_call.1} parent=1 // pred_fallthru
      _
    // Predicated region
    $region14: #{tpu_custom_call.1} parent=1 // pred_check
      _
    $region15: #{tpu_custom_call.1} parent=1 // pred_check_branch
      %23 = sbr.rel (0) target = $region17
    $region16: #{tpu_custom_call.1} parent=1 // pred_region
      _
    $region17: #{tpu_custom_call.1} parent=1 // pred_fallthru
      _
    // Predicated region
    $region18: #{tpu_custom_call.1} parent=1 // pred_check
      _
    $region19: #{tpu_custom_call.1} parent=1 // pred_check_branch
      %25 = sbr.rel (0) target = $region21
    $region20: #{tpu_custom_call.1} parent=1 // pred_region
      %s27 = ssub.s32 3072, 3072
      %28 = vsyncadd [#allocation5], %s27
      %s29 = sshll.u32 [#allocation4], 4
      %s30 = int_to_ptr.vmem [resolvable:$true] %s29
      %35 = dma.hbm_to_vmem [thread:$0]  %s4, 3072, %s30, [#allocation5], 64, 64, 4
    $region21: #{tpu_custom_call.1} parent=1 // pred_fallthru
      _
    // Predicated region
    $region22: #{tpu_custom_call.1} parent=1 // pred_check
      _
    $region23: #{tpu_custom_call.1} parent=1 // pred_check_branch
      %37 = sbr.rel (0) target = $region25
    $region24: #{tpu_custom_call.1} parent=1 // pred_region
      _
    $region25: #{tpu_custom_call.1} parent=1 // pred_fallthru
      _
    // Predicated region
    $region26: #{tpu_custom_call.1} parent=1 // pred_check
      _
    $region27: #{tpu_custom_call.1} parent=1 // pred_check_branch
      %39 = sbr.rel (0) target = $region29
    $region28: #{tpu_custom_call.1} parent=1 // pred_region
      _
    $region29: #{tpu_custom_call.1} parent=1 // pred_fallthru
      _
    // Predicated region
    $region30: #{tpu_custom_call.1} parent=1 // pred_check
      _
    $region31: #{tpu_custom_call.1} parent=1 // pred_check_branch
      %41 = sbr.rel (0) target = $region33
    $region32: #{tpu_custom_call.1} parent=1 // pred_region
      _
    $region33: #{tpu_custom_call.1} parent=1 // pred_fallthru
      _
    // Predicated region
    $region34: #{tpu_custom_call.1} parent=1 // pred_check
      _
    $region35: #{tpu_custom_call.1} parent=1 // pred_check_branch
      %43 = sbr.rel (0) target = $region37
    $region36: #{tpu_custom_call.1} parent=1 // pred_region
      _
    $region37: #{tpu_custom_call.1} parent=1 // pred_fallthru
      _
    // Predicated region
    $region38: #{tpu_custom_call.1} parent=1 // pred_check
      _
    $region39: #{tpu_custom_call.1} parent=1 // pred_check_branch
      %45 = sbr.rel (0) target = $region41
    $region40: #{tpu_custom_call.1} parent=1 // pred_region
      %46 = dma.done [#allocation5], 3072
    $region41: #{tpu_custom_call.1} parent=1 // pred_fallthru
      _
    %v48 = vld [vmem:[%s7] sm:$0xff]
    %v49 = vld [vmem:[%s7 + $0x8] sm:$0xff]
    %v50 = vld [vmem:[%s7 + $0x10] sm:$0xff]
    %v51 = vld [vmem:[%s7 + $0x18] sm:$0xff]
    %v52 = vld [vmem:[%s7 + $0x20] sm:$0xff]
    %v53 = vld [vmem:[%s7 + $0x28] sm:$0xff]
    %v54 = vld [vmem:[%s7 + $0x30] sm:$0xff]
    %v55 = vld [vmem:[%s7 + $0x38] sm:$0xff]
    %v56 = vld [vmem:[%s7 + $0x40] sm:$0xff]
    %v57 = vld [vmem:[%s7 + $0x48] sm:$0xff]
    %v58 = vld [vmem:[%s7 + $0x50] sm:$0xff]
    %v59 = vld [vmem:[%s7 + $0x58] sm:$0xff]
    %v60 = vld [vmem:[%s7 + $0x60] sm:$0xff]
    %v61 = vld [vmem:[%s7 + $0x68] sm:$0xff]
    %v62 = vld [vmem:[%s7 + $0x70] sm:$0xff]
    %v63 = vld [vmem:[%s7 + $0x78] sm:$0xff]
    %v64 = vld [vmem:[%s8] sm:$0xff]
    %vm65 = vcmask 516096
    %vm66 = vsmask.f32 256
    %vm67 = vmand %vm65, %vm66
    %v68 = vld [vmem:[#allocation2] sm:$0x1]
    %v69 = vsel %vm67, 0, %v68
    %70 = vst [vmem:[#allocation2] sm:$0x1] %v69
    %v71 = vld [vmem:[#allocation2 + $0xc] sm:$0x1]
    %v72 = vsel %vm67, 0, %v71
    %73 = vst [vmem:[#allocation2 + $0xc] sm:$0x1] %v72
    %vm74 = vsmask.f32 7938
    %vm75 = vmand %vm65, %vm74
    %v76 = vld [vmem:[#allocation2 + $0x8] sm:$0x1]
    %v77 = vsel %vm75, 0, %v76
    %78 = vst [vmem:[#allocation2 + $0x8] sm:$0x1] %v77
    %v79 = vld [vmem:[#allocation2 + $0x14] sm:$0x1]
    %v80 = vsel %vm75, 0, %v79
    %81 = vst [vmem:[#allocation2 + $0x14] sm:$0x1] %v80
    %v82 = vld [vmem:[%s0] sm:$0xf]
    %v83 = vld [vmem:[%s0 + $0x4] sm:$0xf]
    %v84 = vld [vmem:[%s0 + $0x8] sm:$0xf]
    %v85 = vld [vmem:[%s0 + $0xc] sm:$0xf]
    %vm86 = vsmask.f32 4368
    %vm87 = vmor %vm66, %vm86
    %v89 = vshrl.u32 %v82, 16
    %v91 = vrot.slane %v89, 7
    %v92 = vshll.u32 %v82, 16
    %v94 = vor.u32 %v91, %v92
    %v95 = vrot.slane %v91, 4
    %v97 = vshrl.u32 %v83, 16
    %v99 = vrot.slane %v97, 7
    %v100 = vshll.u32 %v83, 16
    %v102 = vor.u32 %v99, %v100
    %v103 = vsel %vm87, %v95, %v102
    %v104 = vrot.slane %v99, 4
    %v106 = vshrl.u32 %v84, 16
    %v108 = vrot.slane %v106, 7
    %v109 = vshll.u32 %v84, 16
    %v111 = vor.u32 %v108, %v109
    %v112 = vrot.slane %v108, 4
    %v114 = vshrl.u32 %v85, 16
    %v116 = vrot.slane %v114, 7
    %v117 = vshll.u32 %v85, 16
    %v119 = vor.u32 %v116, %v117
    %v120 = vsel %vm87, %v112, %v119
    %v121 = vrot.slane %v116, 4
    %vm128 = vcmask 519168
    %vm129 = vmand %vm128, %vm74
    %v130 = vld [vmem:[#allocation2] sm:$0xf]
    %v131 = vsel %vm129, %v94, %v130
    %132 = vst [vmem:[#allocation2] sm:$0xf] %v131
    %vm133 = vcmask 519168
    %134 = vst.msk [vmem:[#allocation2 + $0x4] sm:$0xf] %vm133, %v103
    %v135 = vld [vmem:[#allocation2 + $0x8] sm:$0x1]
    %v136 = vsel %vm67, %v104, %v135
    %137 = vst [vmem:[#allocation2 + $0x8] sm:$0x1] %v136
    %v138 = vld [vmem:[#allocation2 + $0xc] sm:$0xf]
    %v139 = vsel %vm129, %v111, %v138
    %140 = vst [vmem:[#allocation2 + $0xc] sm:$0xf] %v139
    %141 = vst.msk [vmem:[#allocation2 + $0x10] sm:$0xf] %vm133, %v120
    %v142 = vld [vmem:[#allocation2 + $0x14] sm:$0x1]
    %v143 = vsel %vm67, %v121, %v142
    %144 = vst [vmem:[#allocation2 + $0x14] sm:$0x1] %v143
    %v145 = vld [vmem:[#allocation2] sm:$0xf]
    %v146 = vld [vmem:[#allocation2 + $0x4] sm:$0xf]
    %v147 = vld [vmem:[#allocation2 + $0xc] sm:$0xf]
    %v148 = vld [vmem:[#allocation2 + $0x10] sm:$0xf]
    %v149 = vld [vmem:[%s1] sm:$0xf]
    %v150 = vld [vmem:[%s1 + $0x4] sm:$0xf]
    %v151 = vld [vmem:[%s1 + $0x8] sm:$0xf]
    %v152 = vld [vmem:[%s1 + $0xc] sm:$0xf]
    %v153 = vld [vmem:[%s1 + $0x10] sm:$0xf]
    %v154 = vld [vmem:[%s1 + $0x14] sm:$0xf]
    %v155 = vld [vmem:[%s1 + $0x18] sm:$0xf]
    %v156 = vld [vmem:[%s1 + $0x1c] sm:$0xf]
    %v157 = vld [vmem:[#allocation2 + $0x8] sm:$0x1]
    %v158 = vld [vmem:[#allocation2 + $0x14] sm:$0x1]
    %vm159 = vsmask.f32 3328
    %vm160 = vsmask.f32 7440
    %vm161 = vmor %vm159, %vm160
    %v163 = vshrl.u32 %v145, 16
    %v165 = vrot.slane %v163, 4
    %v166 = vshll.u32 %v145, 16
    %v168 = vrot.slane %v166, 5
    %v169 = vor.u32 %v165, %v168
    %v170 = vrot.slane %v169, 4
    %v172 = vshll.u32 %v146, 16
    %v174 = vrot.slane %v172, 5
    %v175 = vsel %vm161, %v170, %v174
    %v176 = vshrl.u32 %v146, 16
    %v178 = vrot.slane %v176, 4
    %v179 = vor.u32 %v178, %v174
    %v180 = vrot.slane %v179, 4
    %v182 = vshll.u32 %v157, 16
    %v184 = vrot.slane %v182, 5
    %v185 = vsel %vm161, %v180, %v184
    %v187 = vshrl.u32 %v147, 16
    %v189 = vrot.slane %v187, 4
    %v190 = vshll.u32 %v147, 16
    %v192 = vrot.slane %v190, 5
    %v193 = vor.u32 %v189, %v192
    %v194 = vrot.slane %v193, 4
    %v196 = vshll.u32 %v148, 16
    %v198 = vrot.slane %v196, 5
    %v199 = vsel %vm161, %v194, %v198
    %v200 = vshrl.u32 %v148, 16
    %v202 = vrot.slane %v200, 4
    %v203 = vor.u32 %v202, %v198
    %v204 = vrot.slane %v203, 4
    %v206 = vshll.u32 %v158, 16
    %v208 = vrot.slane %v206, 5
    %v209 = vsel %vm161, %v204, %v208
    %s210 = scalar_lea.vmem %s1, 32
    %v211 = vld [vmem:[%s210] sm:$0xf]
    %v212 = vld [vmem:[%s210 + $0x4] sm:$0xf]
    %v213 = vld [vmem:[%s210 + $0x8] sm:$0xf]
    %v214 = vld [vmem:[%s210 + $0xc] sm:$0xf]
    %v215 = vld [vmem:[%s210 + $0x10] sm:$0xf]
    %v216 = vld [vmem:[%s210 + $0x14] sm:$0xf]
    %v217 = vld [vmem:[%s210 + $0x18] sm:$0xf]
    %v218 = vld [vmem:[%s210 + $0x1c] sm:$0xf]
    %v219 = vunpack.c.l.b16 %v175
    %v220 = vunpack.c.l.b16 %v185
    %v221 = vunpack.c.l.b16 %v199
    %v222 = vunpack.c.l.b16 %v209
    %v223 = vpack.c.b16 %v220, %v219
    %v224 = vpack.c.b16 %v222, %v221
    %v233 = vunpack.c.l.b16 %v211
    %v234 = vunpack.c.l.b16 %v212
    %v235 = vunpack.c.l.b16 %v213
    %v236 = vunpack.c.l.b16 %v214
    %v237 = vunpack.c.l.b16 %v215
    %v238 = vunpack.c.l.b16 %v216
    %v239 = vunpack.c.l.b16 %v217
    %v240 = vunpack.c.l.b16 %v218
    %v241 = vpack.c.b16 %v234, %v233
    %v242 = vpack.c.b16 %v236, %v235
    %v243 = vpack.c.b16 %v238, %v237
    %v244 = vpack.c.b16 %v240, %v239
    %vm249 = vcmask 523264
    %v251 = vsel %vm249, %v223, 0
    %v254 = vsel %vm249, %v224, 0
    %256 = vmatprep.subr.bf16.mxu0 0
    %257 = vmatpush1.bf16.msra.mxu0 %v241
    %258 = vmatprep.subr.bf16.mxu0 0
    %259 = vmatpush1.bf16.msra.mxu0 %v242
    %260 = vmatprep.subr.bf16.mxu0 0
    %261 = vmatpush1.bf16.msra.mxu0 %v243
    %262 = vmatprep.subr.bf16.mxu0 0
    %263 = vmatpush1.bf16.msra.mxu0 %v244
    %264 = vmatprep.subr.bf16.mxu0 0
    %265 = vmatpush1.bf16.msra.mxu0 0
    %266 = vmatprep.subr.bf16.mxu0 0
    %267 = vmatpush1.bf16.msra.mxu0 0
    %268 = vmatprep.subr.bf16.mxu0 0
    %269 = vmatpush1.bf16.msra.mxu0 0
    %270 = vmatprep.subr.bf16.mxu0 0
    %271 = vmatpush1.bf16.msra.mxu0 0
    %272 = vmatprep.subr.bf16.mxu0 0
    %273 = vmatpush1.bf16.msra.mxu0 0
    %274 = vmatprep.subr.bf16.mxu0 0
    %275 = vmatpush1.bf16.msra.mxu0 0
    %276 = vmatprep.subr.bf16.mxu0 0
    %277 = vmatpush1.bf16.msra.mxu0 0
    %278 = vmatprep.subr.bf16.mxu0 0
    %279 = vmatpush1.bf16.msra.mxu0 0
    %280 = vmatprep.subr.bf16.mxu0 0
    %281 = vmatpush1.bf16.msra.mxu0 0
    %282 = vmatprep.subr.bf16.mxu0 0
    %283 = vmatpush1.bf16.msra.mxu0 0
    %284 = vmatprep.subr.bf16.mxu0 0
    %285 = vmatpush1.bf16.msra.mxu0 0
    %286 = vmatprep.subr.bf16.mxu0 0
    %287 = vmatpush1.bf16.msra.mxu0 0
    %288 = vmatprep.mubr.bf16.mxu0 0
    %289 = vmatmul.mubr.bf16.gmra.mrb[0].mxu0 %v251
    %v290 = vpop.f32.mrb[0].mxu0
    %v291 = vadd.f32 0.0, %v290
    %v292 = vpop.f32.mrb[0].mxu0
    %v293 = vpop.f32.mrb[0].mxu0
    %v294 = vadd.f32 0.0, %v293
    %v295 = vpop.f32.mrb[0].mxu0
    %296 = vmatprep.mubr.bf16.mxu0 0
    %297 = vmatmul.mubr.bf16.gmra.mrb[0].mxu0 %v254
    %v298 = vpop.f32.mrb[0].mxu0
    %v299 = vadd.f32 0.0, %v298
    %v300 = vpop.f32.mrb[0].mxu0
    %v301 = vpop.f32.mrb[0].mxu0
    %v302 = vadd.f32 0.0, %v301
    %v303 = vpop.f32.mrb[0].mxu0
    %304 = vdwg.mxu0
    %v309 = vunpack.c.l.b16 %v145
    %v310 = vunpack.c.l.b16 %v146
    %v311 = vunpack.c.l.b16 %v147
    %v312 = vunpack.c.l.b16 %v148
    %v313 = vpack.c.b16 %v310, %v309
    %v314 = vpack.c.b16 %v312, %v311
    %v323 = vunpack.c.l.b16 %v149
    %v324 = vunpack.c.l.b16 %v150
    %v325 = vunpack.c.l.b16 %v151
    %v326 = vunpack.c.l.b16 %v152
    %v327 = vunpack.c.l.b16 %v153
    %v328 = vunpack.c.l.b16 %v154
    %v329 = vunpack.c.l.b16 %v155
    %v330 = vunpack.c.l.b16 %v156
    %v331 = vpack.c.b16 %v324, %v323
    %v332 = vpack.c.b16 %v326, %v325
    %v333 = vpack.c.b16 %v328, %v327
    %v334 = vpack.c.b16 %v330, %v329
    %v340 = vsel %vm249, %v313, 0
    %v343 = vsel %vm249, %v314, 0
    %345 = vmatprep.subr.bf16.mxu0 0
    %346 = vmatpush1.bf16.msra.mxu0 %v331
    %347 = vmatprep.subr.bf16.mxu0 0
    %348 = vmatpush1.bf16.msra.mxu0 %v332
    %349 = vmatprep.subr.bf16.mxu0 0
    %350 = vmatpush1.bf16.msra.mxu0 %v333
    %351 = vmatprep.subr.bf16.mxu0 0
    %352 = vmatpush1.bf16.msra.mxu0 %v334
    %353 = vmatprep.subr.bf16.mxu0 0
    %354 = vmatpush1.bf16.msra.mxu0 0
    %355 = vmatprep.subr.bf16.mxu0 0
    %356 = vmatpush1.bf16.msra.mxu0 0
    %357 = vmatprep.subr.bf16.mxu0 0
    %358 = vmatpush1.bf16.msra.mxu0 0
    %359 = vmatprep.subr.bf16.mxu0 0
    %360 = vmatpush1.bf16.msra.mxu0 0
    %361 = vmatprep.subr.bf16.mxu0 0
    %362 = vmatpush1.bf16.msra.mxu0 0
    %363 = vmatprep.subr.bf16.mxu0 0
    %364 = vmatpush1.bf16.msra.mxu0 0
    %365 = vmatprep.subr.bf16.mxu0 0
    %366 = vmatpush1.bf16.msra.mxu0 0
    %367 = vmatprep.subr.bf16.mxu0 0
    %368 = vmatpush1.bf16.msra.mxu0 0
    %369 = vmatprep.subr.bf16.mxu0 0
    %370 = vmatpush1.bf16.msra.mxu0 0
    %371 = vmatprep.subr.bf16.mxu0 0
    %372 = vmatpush1.bf16.msra.mxu0 0
    %373 = vmatprep.subr.bf16.mxu0 0
    %374 = vmatpush1.bf16.msra.mxu0 0
    %375 = vmatprep.subr.bf16.mxu0 0
    %376 = vmatpush1.bf16.msra.mxu0 0
    %377 = vmatprep.mubr.bf16.mxu0 0
    %378 = vmatmul.mubr.bf16.gmra.mrb[0].mxu0 %v340
    %v379 = vpop.f32.mrb[0].mxu0
    %v380 = vadd.f32 %v291, %v379
    %v381 = vpop.f32.mrb[0].mxu0
    %v382 = vpop.f32.mrb[0].mxu0
    %v383 = vadd.f32 %v294, %v382
    %v384 = vpop.f32.mrb[0].mxu0
    %385 = vmatprep.mubr.bf16.mxu0 0
    %386 = vmatmul.mubr.bf16.gmra.mrb[0].mxu0 %v343
    %v387 = vpop.f32.mrb[0].mxu0
    %v388 = vadd.f32 %v299, %v387
    %v389 = vpop.f32.mrb[0].mxu0
    %v390 = vpop.f32.mrb[0].mxu0
    %v391 = vadd.f32 %v302, %v390
    %v392 = vpop.f32.mrb[0].mxu0
    %393 = vdwg.mxu0
    %v394 = vld [vmem:[#allocation2] sm:$0xe]
    %v395 = vld [vmem:[#allocation2 + $0xc] sm:$0xe]
    %vm400 = vcmask 1042432
    %vm401 = vcmask 1046532
    %vm402 = vmor %vm400, %vm401
    %v403 = vrot.slane %v394, 5
    %v404 = vrot.slane %v403, 4
    %v405 = vrot.slane %v146, 5
    %v406 = vsel %vm402, %v404, %v405
    %v407 = vrot.slane %v405, 4
    %v408 = vrot.slane %v157, 5
    %v409 = vsel %vm402, %v407, %v408
    %v410 = vrot.slane %v395, 5
    %v411 = vrot.slane %v410, 4
    %v412 = vrot.slane %v148, 5
    %v413 = vsel %vm402, %v411, %v412
    %v414 = vrot.slane %v412, 4
    %v415 = vrot.slane %v158, 5
    %v416 = vsel %vm402, %v414, %v415
    %s417 = scalar_lea.vmem %s1, 64
    %v418 = vld [vmem:[%s417] sm:$0xf]
    %v419 = vld [vmem:[%s417 + $0x4] sm:$0xf]
    %v420 = vld [vmem:[%s417 + $0x8] sm:$0xf]
    %v421 = vld [vmem:[%s417 + $0xc] sm:$0xf]
    %v422 = vld [vmem:[%s417 + $0x10] sm:$0xf]
    %v423 = vld [vmem:[%s417 + $0x14] sm:$0xf]
    %v424 = vld [vmem:[%s417 + $0x18] sm:$0xf]
    %v425 = vld [vmem:[%s417 + $0x1c] sm:$0xf]
    %v426 = vunpack.c.l.b16 %v406
    %v427 = vunpack.c.l.b16 %v409
    %v428 = vunpack.c.l.b16 %v413
    %v429 = vunpack.c.l.b16 %v416
    %v430 = vpack.c.b16 %v427, %v426
    %v431 = vpack.c.b16 %v429, %v428
    %v440 = vunpack.c.l.b16 %v418
    %v441 = vunpack.c.l.b16 %v419
    %v442 = vunpack.c.l.b16 %v420
    %v443 = vunpack.c.l.b16 %v421
    %v444 = vunpack.c.l.b16 %v422
    %v445 = vunpack.c.l.b16 %v423
    %v446 = vunpack.c.l.b16 %v424
    %v447 = vunpack.c.l.b16 %v425
    %v448 = vpack.c.b16 %v441, %v440
    %v449 = vpack.c.b16 %v443, %v442
    %v450 = vpack.c.b16 %v445, %v444
    %v451 = vpack.c.b16 %v447, %v446
    %v457 = vsel %vm249, %v430, 0
    %v460 = vsel %vm249, %v431, 0
    %462 = vmatprep.subr.bf16.mxu0 0
    %463 = vmatpush1.bf16.msra.mxu0 %v448
    %464 = vmatprep.subr.bf16.mxu0 0
    %465 = vmatpush1.bf16.msra.mxu0 %v449
    %466 = vmatprep.subr.bf16.mxu0 0
    %467 = vmatpush1.bf16.msra.mxu0 %v450
    %468 = vmatprep.subr.bf16.mxu0 0
    %469 = vmatpush1.bf16.msra.mxu0 %v451
    %470 = vmatprep.subr.bf16.mxu0 0
    %471 = vmatpush1.bf16.msra.mxu0 0
    %472 = vmatprep.subr.bf16.mxu0 0
    %473 = vmatpush1.bf16.msra.mxu0 0
    %474 = vmatprep.subr.bf16.mxu0 0
    %475 = vmatpush1.bf16.msra.mxu0 0
    %476 = vmatprep.subr.bf16.mxu0 0
    %477 = vmatpush1.bf16.msra.mxu0 0
    %478 = vmatprep.subr.bf16.mxu0 0
    %479 = vmatpush1.bf16.msra.mxu0 0
    %480 = vmatprep.subr.bf16.mxu0 0
    %481 = vmatpush1.bf16.msra.mxu0 0
    %482 = vmatprep.subr.bf16.mxu0 0
    %483 = vmatpush1.bf16.msra.mxu0 0
    %484 = vmatprep.subr.bf16.mxu0 0
    %485 = vmatpush1.bf16.msra.mxu0 0
    %486 = vmatprep.subr.bf16.mxu0 0
    %487 = vmatpush1.bf16.msra.mxu0 0
    %488 = vmatprep.subr.bf16.mxu0 0
    %489 = vmatpush1.bf16.msra.mxu0 0
    %490 = vmatprep.subr.bf16.mxu0 0
    %491 = vmatpush1.bf16.msra.mxu0 0
    %492 = vmatprep.subr.bf16.mxu0 0
    %493 = vmatpush1.bf16.msra.mxu0 0
    %494 = vmatprep.mubr.bf16.mxu0 0
    %495 = vmatmul.mubr.bf16.gmra.mrb[0].mxu0 %v457
    %v496 = vpop.f32.mrb[0].mxu0
    %v497 = vadd.f32 0.0, %v496
    %v498 = vpop.f32.mrb[0].mxu0
    %v499 = vpop.f32.mrb[0].mxu0
    %v500 = vadd.f32 0.0, %v499
    %v501 = vpop.f32.mrb[0].mxu0
    %502 = vmatprep.mubr.bf16.mxu0 0
    %503 = vmatmul.mubr.bf16.gmra.mrb[0].mxu0 %v460
    %v504 = vpop.f32.mrb[0].mxu0
    %v505 = vadd.f32 0.0, %v504
    %v506 = vpop.f32.mrb[0].mxu0
    %v507 = vpop.f32.mrb[0].mxu0
    %v508 = vadd.f32 0.0, %v507
    %v509 = vpop.f32.mrb[0].mxu0
    %510 = vdwg.mxu0
    %v511 = vadd.f32 %v380, %v497
    %v512 = vadd.f32 %v383, %v500
    %v513 = vadd.f32 %v388, %v505
    %v514 = vadd.f32 %v391, %v508
    %v515 = vld [vmem:[%s2] sm:$0x1]
    %v516 = vld [vmem:[%s3] sm:$0x1]
    %v517 = vadd.f32 %v511, %v512
    %v518 = vadd.f32 %v517, %v513
    %v519 = vadd.f32 %v518, %v514
    %v520 = vrot.slane %v519, 4
    %v521 = vadd.f32 %v519, %v520
    %v522 = vrot.slane %v521, 2
    %v523 = vadd.f32 %v521, %v522
    %v524 = vrot.slane %v523, 1
    %v525 = vadd.f32 %v523, %v524
    %v526 = vmul.f32 %v511, %v511
    %v527 = vmul.f32 %v512, %v512
    %v528 = vmul.f32 %v513, %v513
    %v529 = vmul.f32 %v514, %v514
    %v530 = vadd.f32 %v526, %v527
    %v531 = vadd.f32 %v530, %v528
    %v532 = vadd.f32 %v531, %v529
    %v533 = vrot.slane %v532, 4
    %v534 = vadd.f32 %v532, %v533
    %v535 = vrot.slane %v534, 2
    %v536 = vadd.f32 %v534, %v535
    %v537 = vrot.slane %v536, 1
    %v538 = vadd.f32 %v536, %v537
    %539 = vmatprep.subr.mxu0 0.0
    %540 = vmatpush1.msra.mxu0 %v48
    %541 = vmatprep.subr.mxu0 0.0
    %542 = vmatpush1.msra.mxu0 %v49
    %543 = vmatprep.subr.mxu0 0.0
    %544 = vmatpush1.msra.mxu0 %v50
    %545 = vmatprep.subr.mxu0 0.0
    %546 = vmatpush1.msra.mxu0 %v51
    %547 = vmatprep.subr.mxu0 0.0
    %548 = vmatpush1.msra.mxu0 %v52
    %549 = vmatprep.subr.mxu0 0.0
    %550 = vmatpush1.msra.mxu0 %v53
    %551 = vmatprep.subr.mxu0 0.0
    %552 = vmatpush1.msra.mxu0 %v54
    %553 = vmatprep.subr.mxu0 0.0
    %554 = vmatpush1.msra.mxu0 %v55
    %555 = vmatprep.subr.mxu0 0.0
    %556 = vmatpush1.msra.mxu0 %v56
    %557 = vmatprep.subr.mxu0 0.0
    %558 = vmatpush1.msra.mxu0 %v57
    %559 = vmatprep.subr.mxu0 0.0
    %560 = vmatpush1.msra.mxu0 %v58
    %561 = vmatprep.subr.mxu0 0.0
    %562 = vmatpush1.msra.mxu0 %v59
    %563 = vmatprep.subr.mxu0 0.0
    %564 = vmatpush1.msra.mxu0 %v60
    %565 = vmatprep.subr.mxu0 0.0
    %566 = vmatpush1.msra.mxu0 %v61
    %567 = vmatprep.subr.mxu0 0.0
    %568 = vmatpush1.msra.mxu0 %v62
    %569 = vmatprep.subr.mxu0 0.0
    %570 = vmatpush1.msra.mxu0 %v63
    %571 = vmatprep.subr.mxu0 0.0
    %572 = vmatpush1.msra.mxu0 0.0
    %573 = vmatprep.subr.mxu0 0.0
    %574 = vmatpush1.msra.mxu0 0.0
    %575 = vmatprep.subr.mxu0 0.0
    %576 = vmatpush1.msra.mxu0 0.0
    %577 = vmatprep.subr.mxu0 0.0
    %578 = vmatpush1.msra.mxu0 0.0
    %579 = vmatprep.subr.mxu0 0.0
    %580 = vmatpush1.msra.mxu0 0.0
    %581 = vmatprep.subr.mxu0 0.0
    %582 = vmatpush1.msra.mxu0 0.0
    %583 = vmatprep.subr.mxu0 0.0
    %584 = vmatpush1.msra.mxu0 0.0
    %585 = vmatprep.subr.mxu0 0.0
    %586 = vmatpush1.msra.mxu0 0.0
    %587 = vmatprep.subr.mxu0 0.0
    %588 = vmatpush1.msra.mxu0 0.0
    %589 = vmatprep.subr.mxu0 0.0
    %590 = vmatpush1.msra.mxu0 0.0
    %591 = vmatprep.subr.mxu0 0.0
    %592 = vmatpush1.msra.mxu0 0.0
    %593 = vmatprep.subr.mxu0 0.0
    %594 = vmatpush1.msra.mxu0 0.0
    %595 = vmatprep.subr.mxu0 0.0
    %596 = vmatpush1.msra.mxu0 0.0
    %597 = vmatprep.subr.mxu0 0.0
    %598 = vmatpush1.msra.mxu0 0.0
    %599 = vmatprep.subr.mxu0 0.0
    %600 = vmatpush1.msra.mxu0 0.0
    %601 = vmatprep.subr.mxu0 0.0
    %602 = vmatpush1.msra.mxu0 0.0
    %603 = vmatprep.mubr.f32.mxu0 0.0
    %604 = vmatmul.mubr.f32.gmra.mrb[0].mxu0 %v525
    %v605 = vpop.f32.mrb[0].mxu0
    %v606 = vadd.f32 0.0, %v605
    %v607 = vpop.f32.mrb[0].mxu0
    %608 = vdwg.mxu0
    %v609 = vmul.f32 %v606, 0.001953125
    %610 = vmatprep.subr.mxu0 0.0
    %611 = vmatpush1.msra.mxu0 %v48
    %612 = vmatprep.subr.mxu0 0.0
    %613 = vmatpush1.msra.mxu0 %v49
    %614 = vmatprep.subr.mxu0 0.0
    %615 = vmatpush1.msra.mxu0 %v50
    %616 = vmatprep.subr.mxu0 0.0
    %617 = vmatpush1.msra.mxu0 %v51
    %618 = vmatprep.subr.mxu0 0.0
    %619 = vmatpush1.msra.mxu0 %v52
    %620 = vmatprep.subr.mxu0 0.0
    %621 = vmatpush1.msra.mxu0 %v53
    %622 = vmatprep.subr.mxu0 0.0
    %623 = vmatpush1.msra.mxu0 %v54
    %624 = vmatprep.subr.mxu0 0.0
    %625 = vmatpush1.msra.mxu0 %v55
    %626 = vmatprep.subr.mxu0 0.0
    %627 = vmatpush1.msra.mxu0 %v56
    %628 = vmatprep.subr.mxu0 0.0
    %629 = vmatpush1.msra.mxu0 %v57
    %630 = vmatprep.subr.mxu0 0.0
    %631 = vmatpush1.msra.mxu0 %v58
    %632 = vmatprep.subr.mxu0 0.0
    %633 = vmatpush1.msra.mxu0 %v59
    %634 = vmatprep.subr.mxu0 0.0
    %635 = vmatpush1.msra.mxu0 %v60
    %636 = vmatprep.subr.mxu0 0.0
    %637 = vmatpush1.msra.mxu0 %v61
    %638 = vmatprep.subr.mxu0 0.0
    %639 = vmatpush1.msra.mxu0 %v62
    %640 = vmatprep.subr.mxu0 0.0
    %641 = vmatpush1.msra.mxu0 %v63
    %642 = vmatprep.subr.mxu0 0.0
    %643 = vmatpush1.msra.mxu0 0.0
    %644 = vmatprep.subr.mxu0 0.0
    %645 = vmatpush1.msra.mxu0 0.0
    %646 = vmatprep.subr.mxu0 0.0
    %647 = vmatpush1.msra.mxu0 0.0
    %648 = vmatprep.subr.mxu0 0.0
    %649 = vmatpush1.msra.mxu0 0.0
    %650 = vmatprep.subr.mxu0 0.0
    %651 = vmatpush1.msra.mxu0 0.0
    %652 = vmatprep.subr.mxu0 0.0
    %653 = vmatpush1.msra.mxu0 0.0
    %654 = vmatprep.subr.mxu0 0.0
    %655 = vmatpush1.msra.mxu0 0.0
    %656 = vmatprep.subr.mxu0 0.0
    %657 = vmatpush1.msra.mxu0 0.0
    %658 = vmatprep.subr.mxu0 0.0
    %659 = vmatpush1.msra.mxu0 0.0
    %660 = vmatprep.subr.mxu0 0.0
    %661 = vmatpush1.msra.mxu0 0.0
    %662 = vmatprep.subr.mxu0 0.0
    %663 = vmatpush1.msra.mxu0 0.0
    %664 = vmatprep.subr.mxu0 0.0
    %665 = vmatpush1.msra.mxu0 0.0
    %666 = vmatprep.subr.mxu0 0.0
    %667 = vmatpush1.msra.mxu0 0.0
    %668 = vmatprep.subr.mxu0 0.0
    %669 = vmatpush1.msra.mxu0 0.0
    %670 = vmatprep.subr.mxu0 0.0
    %671 = vmatpush1.msra.mxu0 0.0
    %672 = vmatprep.subr.mxu0 0.0
    %673 = vmatpush1.msra.mxu0 0.0
    %674 = vmatprep.mubr.f32.mxu0 0.0
    %675 = vmatmul.mubr.f32.gmra.mrb[0].mxu0 %v538
    %v676 = vpop.f32.mrb[0].mxu0
    %v677 = vadd.f32 0.0, %v676
    %v678 = vpop.f32.mrb[0].mxu0
    %679 = vdwg.mxu0
    %v680 = vmul.f32 %v677, 0.001953125
    %v681 = vmul.f32 %v609, %v609
    %v682 = vsub.f32 %v680, %v681
    %v683 = vmax.f32 %v682, 0.0
    %v684 = vadd.f32 %v683, 1e-05
    %v685 = vrsqrt.pop %v684
    %v686 = vmul.f32 %v685, %v515
    %v687 = vmul.f32 %v609, %v686
    %v688 = vsub.f32 %v516, %v687
    %vm689 = vcmask 64512
    %v691 = vsel %vm689, %v686, 0
    %693 = vmatprep.subr.mxu0 0.0
    %694 = vmatpush1.msra.mxu0 %v64
    %695 = vmatprep.subr.mxu0 0.0
    %696 = vmatpush1.msra.mxu0 0.0
    %697 = vmatprep.subr.mxu0 0.0
    %698 = vmatpush1.msra.mxu0 0.0
    %699 = vmatprep.subr.mxu0 0.0
    %700 = vmatpush1.msra.mxu0 0.0
    %701 = vmatprep.subr.mxu0 0.0
    %702 = vmatpush1.msra.mxu0 0.0
    %703 = vmatprep.subr.mxu0 0.0
    %704 = vmatpush1.msra.mxu0 0.0
    %705 = vmatprep.subr.mxu0 0.0
    %706 = vmatpush1.msra.mxu0 0.0
    %707 = vmatprep.subr.mxu0 0.0
    %708 = vmatpush1.msra.mxu0 0.0
    %709 = vmatprep.subr.mxu0 0.0
    %710 = vmatpush1.msra.mxu0 0.0
    %711 = vmatprep.subr.mxu0 0.0
    %712 = vmatpush1.msra.mxu0 0.0
    %713 = vmatprep.subr.mxu0 0.0
    %714 = vmatpush1.msra.mxu0 0.0
    %715 = vmatprep.subr.mxu0 0.0
    %716 = vmatpush1.msra.mxu0 0.0
    %717 = vmatprep.subr.mxu0 0.0
    %718 = vmatpush1.msra.mxu0 0.0
    %719 = vmatprep.subr.mxu0 0.0
    %720 = vmatpush1.msra.mxu0 0.0
    %721 = vmatprep.subr.mxu0 0.0
    %722 = vmatpush1.msra.mxu0 0.0
    %723 = vmatprep.subr.mxu0 0.0
    %724 = vmatpush1.msra.mxu0 0.0
    %725 = vmatprep.subr.mxu0 0.0
    %726 = vmatpush1.msra.mxu0 0.0
    %727 = vmatprep.subr.mxu0 0.0
    %728 = vmatpush1.msra.mxu0 0.0
    %729 = vmatprep.subr.mxu0 0.0
    %730 = vmatpush1.msra.mxu0 0.0
    %731 = vmatprep.subr.mxu0 0.0
    %732 = vmatpush1.msra.mxu0 0.0
    %733 = vmatprep.subr.mxu0 0.0
    %734 = vmatpush1.msra.mxu0 0.0
    %735 = vmatprep.subr.mxu0 0.0
    %736 = vmatpush1.msra.mxu0 0.0
    %737 = vmatprep.subr.mxu0 0.0
    %738 = vmatpush1.msra.mxu0 0.0
    %739 = vmatprep.subr.mxu0 0.0
    %740 = vmatpush1.msra.mxu0 0.0
    %741 = vmatprep.subr.mxu0 0.0
    %742 = vmatpush1.msra.mxu0 0.0
    %743 = vmatprep.subr.mxu0 0.0
    %744 = vmatpush1.msra.mxu0 0.0
    %745 = vmatprep.subr.mxu0 0.0
    %746 = vmatpush1.msra.mxu0 0.0
    %747 = vmatprep.subr.mxu0 0.0
    %748 = vmatpush1.msra.mxu0 0.0
    %749 = vmatprep.subr.mxu0 0.0
    %750 = vmatpush1.msra.mxu0 0.0
    %751 = vmatprep.subr.mxu0 0.0
    %752 = vmatpush1.msra.mxu0 0.0
    %753 = vmatprep.subr.mxu0 0.0
    %754 = vmatpush1.msra.mxu0 0.0
    %755 = vmatprep.subr.mxu0 0.0
    %756 = vmatpush1.msra.mxu0 0.0
    %757 = vmatprep.mubr.f32.mxu0 0.0
    %758 = vmatmul.mubr.f32.gmra.mrb[0].mxu0 %v691
    %v759 = vpop.f32.mrb[0].mxu0
    %v760 = vadd.f32 0.0, %v759
    %v761 = vpop.f32.mrb[0].mxu0
    %762 = vdwg.mxu0
    %v764 = vsel %vm689, %v688, 0
    %766 = vmatprep.subr.mxu0 0.0
    %767 = vmatpush1.msra.mxu0 %v64
    %768 = vmatprep.subr.mxu0 0.0
    %769 = vmatpush1.msra.mxu0 0.0
    %770 = vmatprep.subr.mxu0 0.0
    %771 = vmatpush1.msra.mxu0 0.0
    %772 = vmatprep.subr.mxu0 0.0
    %773 = vmatpush1.msra.mxu0 0.0
    %774 = vmatprep.subr.mxu0 0.0
    %775 = vmatpush1.msra.mxu0 0.0
    %776 = vmatprep.subr.mxu0 0.0
    %777 = vmatpush1.msra.mxu0 0.0
    %778 = vmatprep.subr.mxu0 0.0
    %779 = vmatpush1.msra.mxu0 0.0
    %780 = vmatprep.subr.mxu0 0.0
    %781 = vmatpush1.msra.mxu0 0.0
    %782 = vmatprep.subr.mxu0 0.0
    %783 = vmatpush1.msra.mxu0 0.0
    %784 = vmatprep.subr.mxu0 0.0
    %785 = vmatpush1.msra.mxu0 0.0
    %786 = vmatprep.subr.mxu0 0.0
    %787 = vmatpush1.msra.mxu0 0.0
    %788 = vmatprep.subr.mxu0 0.0
    %789 = vmatpush1.msra.mxu0 0.0
    %790 = vmatprep.subr.mxu0 0.0
    %791 = vmatpush1.msra.mxu0 0.0
    %792 = vmatprep.subr.mxu0 0.0
    %793 = vmatpush1.msra.mxu0 0.0
    %794 = vmatprep.subr.mxu0 0.0
    %795 = vmatpush1.msra.mxu0 0.0
    %796 = vmatprep.subr.mxu0 0.0
    %797 = vmatpush1.msra.mxu0 0.0
    %798 = vmatprep.subr.mxu0 0.0
    %799 = vmatpush1.msra.mxu0 0.0
    %800 = vmatprep.subr.mxu0 0.0
    %801 = vmatpush1.msra.mxu0 0.0
    %802 = vmatprep.subr.mxu0 0.0
    %803 = vmatpush1.msra.mxu0 0.0
    %804 = vmatprep.subr.mxu0 0.0
    %805 = vmatpush1.msra.mxu0 0.0
    %806 = vmatprep.subr.mxu0 0.0
    %807 = vmatpush1.msra.mxu0 0.0
    %808 = vmatprep.subr.mxu0 0.0
    %809 = vmatpush1.msra.mxu0 0.0
    %810 = vmatprep.subr.mxu0 0.0
    %811 = vmatpush1.msra.mxu0 0.0
    %812 = vmatprep.subr.mxu0 0.0
    %813 = vmatpush1.msra.mxu0 0.0
    %814 = vmatprep.subr.mxu0 0.0
    %815 = vmatpush1.msra.mxu0 0.0
    %816 = vmatprep.subr.mxu0 0.0
    %817 = vmatpush1.msra.mxu0 0.0
    %818 = vmatprep.subr.mxu0 0.0
    %819 = vmatpush1.msra.mxu0 0.0
    %820 = vmatprep.subr.mxu0 0.0
    %821 = vmatpush1.msra.mxu0 0.0
    %822 = vmatprep.subr.mxu0 0.0
    %823 = vmatpush1.msra.mxu0 0.0
    %824 = vmatprep.subr.mxu0 0.0
    %825 = vmatpush1.msra.mxu0 0.0
    %826 = vmatprep.subr.mxu0 0.0
    %827 = vmatpush1.msra.mxu0 0.0
    %828 = vmatprep.subr.mxu0 0.0
    %829 = vmatpush1.msra.mxu0 0.0
    %830 = vmatprep.mubr.f32.mxu0 0.0
    %831 = vmatmul.mubr.f32.gmra.mrb[0].mxu0 %v764
    %v832 = vpop.f32.mrb[0].mxu0
    %v833 = vadd.f32 0.0, %v832
    %v834 = vpop.f32.mrb[0].mxu0
    %835 = vdwg.mxu0
    %v836 = vlaneseq
    %v837 = vshrl.u32 %v836, 7
    %v838 = vsub.s32 0, %v837
    %v839 = vrot.slane %v760, %v838
    %v840 = vmul.f32 %v511, %v839
    %v841 = vmul.f32 %v512, %v839
    %v842 = vmul.f32 %v513, %v839
    %v843 = vmul.f32 %v514, %v839
    %v844 = vlaneseq
    %v845 = vshrl.u32 %v844, 7
    %v846 = vsub.s32 0, %v845
    %v847 = vrot.slane %v833, %v846
    %v848 = vadd.f32 %v840, %v847
    %v849 = vadd.f32 %v841, %v847
    %v850 = vadd.f32 %v842, %v847
    %v851 = vadd.f32 %v843, %v847
    %v852 = vmax.f32 %v848, 0.0
    %v853 = vmax.f32 %v849, 0.0
    %v854 = vmax.f32 %v850, 0.0
    %v855 = vmax.f32 %v851, 0.0
    %vm856 = vcmask 1040384
    %vm857 = vmand %vm856, %vm66
    %v858 = vld [vmem:[#allocation3] sm:$0x1]
    %v859 = vsel %vm857, 0, %v858
    %860 = vst [vmem:[#allocation3] sm:$0x1] %v859
    %v861 = vld [vmem:[#allocation3 + $0xc] sm:$0x1]
    %v862 = vsel %vm857, 0, %v861
    %863 = vst [vmem:[#allocation3 + $0xc] sm:$0x1] %v862
    %vm864 = vmand %vm856, %vm74
    %v865 = vld [vmem:[#allocation3 + $0x8] sm:$0x1]
    %v866 = vsel %vm864, 0, %v865
    %867 = vst [vmem:[#allocation3 + $0x8] sm:$0x1] %v866
    %v868 = vld [vmem:[#allocation3 + $0x14] sm:$0x1]
    %v869 = vsel %vm864, 0, %v868
    %870 = vst [vmem:[#allocation3 + $0x14] sm:$0x1] %v869
    %v871 = vpack.c.bf16 %v853, %v852
    %v872 = vpack.c.bf16 %v855, %v854
    %v875 = vunpack.c.l.b16 %v871
    %v876 = vunpack.c.h.b16 %v871
    %v877 = vunpack.c.l.b16 %v872
    %v878 = vunpack.c.h.b16 %v872
    %v879 = vpack.c.b16 %v875, %v875
    %v880 = vpack.c.b16 %v876, %v876
    %v881 = vpack.c.b16 %v877, %v877
    %v882 = vpack.c.b16 %v878, %v878
    %v884 = vshrl.u32 %v879, 16
    %v886 = vrot.slane %v884, 7
    %v887 = vshll.u32 %v879, 16
    %v889 = vor.u32 %v886, %v887
    %v890 = vrot.slane %v886, 4
    %v892 = vshrl.u32 %v880, 16
    %v894 = vrot.slane %v892, 7
    %v895 = vshll.u32 %v880, 16
    %v897 = vor.u32 %v894, %v895
    %v898 = vsel %vm87, %v890, %v897
    %v899 = vrot.slane %v894, 4
    %v901 = vshrl.u32 %v881, 16
    %v903 = vrot.slane %v901, 7
    %v904 = vshll.u32 %v881, 16
    %v906 = vor.u32 %v903, %v904
    %v907 = vrot.slane %v903, 4
    %v909 = vshrl.u32 %v882, 16
    %v911 = vrot.slane %v909, 7
    %v912 = vshll.u32 %v882, 16
    %v914 = vor.u32 %v911, %v912
    %v915 = vsel %vm87, %v907, %v914
    %v916 = vrot.slane %v911, 4
    %vm923 = vcmask 1043456
    %vm924 = vmand %vm923, %vm74
    %v925 = vld [vmem:[#allocation3] sm:$0xf]
    %v926 = vsel %vm924, %v889, %v925
    %927 = vst [vmem:[#allocation3] sm:$0xf] %v926
    %928 = vst [vmem:[#allocation3 + $0x4] sm:$0xf] %v898
    %v929 = vld [vmem:[#allocation3 + $0x8] sm:$0x1]
    %v930 = vsel %vm857, %v899, %v929
    %931 = vst [vmem:[#allocation3 + $0x8] sm:$0x1] %v930
    %v932 = vld [vmem:[#allocation3 + $0xc] sm:$0xf]
    %v933 = vsel %vm924, %v906, %v932
    %934 = vst [vmem:[#allocation3 + $0xc] sm:$0xf] %v933
    %935 = vst [vmem:[#allocation3 + $0x10] sm:$0xf] %v915
    %v936 = vld [vmem:[#allocation3 + $0x14] sm:$0x1]
    %v937 = vsel %vm857, %v916, %v936
    %938 = vst [vmem:[#allocation3 + $0x14] sm:$0x1] %v937
    %v939 = vld [vmem:[#allocation3] sm:$0xf]
    %v940 = vld [vmem:[#allocation3 + $0x4] sm:$0xf]
    %v941 = vld [vmem:[#allocation3 + $0xc] sm:$0xf]
    %v942 = vld [vmem:[#allocation3 + $0x10] sm:$0xf]
    %v943 = vld [vmem:[#allocation4] sm:$0xf]
    %v944 = vld [vmem:[#allocation4 + $0x4] sm:$0xf]
    %v945 = vld [vmem:[#allocation4 + $0x8] sm:$0xf]
    %v946 = vld [vmem:[#allocation4 + $0xc] sm:$0xf]
    %v947 = vld [vmem:[#allocation4 + $0x10] sm:$0xf]
    %v948 = vld [vmem:[#allocation4 + $0x14] sm:$0xf]
    %v949 = vld [vmem:[#allocation4 + $0x18] sm:$0xf]
    %v950 = vld [vmem:[#allocation4 + $0x1c] sm:$0xf]
    %v951 = vld [vmem:[#allocation4 + $0x20] sm:$0xf]
    %v952 = vld [vmem:[#allocation4 + $0x24] sm:$0xf]
    %v953 = vld [vmem:[#allocation4 + $0x28] sm:$0xf]
    %v954 = vld [vmem:[#allocation4 + $0x2c] sm:$0xf]
    %v955 = vld [vmem:[#allocation4 + $0x30] sm:$0xf]
    %v956 = vld [vmem:[#allocation4 + $0x34] sm:$0xf]
    %v957 = vld [vmem:[#allocation4 + $0x38] sm:$0xf]
    %v958 = vld [vmem:[#allocation4 + $0x3c] sm:$0xf]
    %v959 = vld [vmem:[#allocation3 + $0x8] sm:$0x1]
    %v960 = vld [vmem:[#allocation3 + $0x14] sm:$0x1]
    %v962 = vshrl.u32 %v939, 16
    %v964 = vrot.slane %v962, 4
    %v965 = vshll.u32 %v939, 16
    %v967 = vrot.slane %v965, 5
    %v968 = vor.u32 %v964, %v967
    %v969 = vrot.slane %v968, 4
    %v971 = vshll.u32 %v940, 16
    %v973 = vrot.slane %v971, 5
    %v974 = vsel %vm161, %v969, %v973
    %v975 = vshrl.u32 %v940, 16
    %v977 = vrot.slane %v975, 4
    %v978 = vor.u32 %v977, %v973
    %v979 = vrot.slane %v978, 4
    %v981 = vshll.u32 %v959, 16
    %v983 = vrot.slane %v981, 5
    %v984 = vsel %vm161, %v979, %v983
    %v986 = vshrl.u32 %v941, 16
    %v988 = vrot.slane %v986, 4
    %v989 = vshll.u32 %v941, 16
    %v991 = vrot.slane %v989, 5
    %v992 = vor.u32 %v988, %v991
    %v993 = vrot.slane %v992, 4
    %v995 = vshll.u32 %v942, 16
    %v997 = vrot.slane %v995, 5
    %v998 = vsel %vm161, %v993, %v997
    %v999 = vshrl.u32 %v942, 16
    %v1001 = vrot.slane %v999, 4
    %v1002 = vor.u32 %v1001, %v997
    %v1003 = vrot.slane %v1002, 4
    %v1005 = vshll.u32 %v960, 16
    %v1007 = vrot.slane %v1005, 5
    %v1008 = vsel %vm161, %v1003, %v1007
    %s1009 = scalar_lea.vmem [#allocation4], 64
    %v1010 = vld [vmem:[%s1009] sm:$0xf]
    %v1011 = vld [vmem:[%s1009 + $0x4] sm:$0xf]
    %v1012 = vld [vmem:[%s1009 + $0x8] sm:$0xf]
    %v1013 = vld [vmem:[%s1009 + $0xc] sm:$0xf]
    %v1014 = vld [vmem:[%s1009 + $0x10] sm:$0xf]
    %v1015 = vld [vmem:[%s1009 + $0x14] sm:$0xf]
    %v1016 = vld [vmem:[%s1009 + $0x18] sm:$0xf]
    %v1017 = vld [vmem:[%s1009 + $0x1c] sm:$0xf]
    %v1018 = vld [vmem:[%s1009 + $0x20] sm:$0xf]
    %v1019 = vld [vmem:[%s1009 + $0x24] sm:$0xf]
    %v1020 = vld [vmem:[%s1009 + $0x28] sm:$0xf]
    %v1021 = vld [vmem:[%s1009 + $0x2c] sm:$0xf]
    %v1022 = vld [vmem:[%s1009 + $0x30] sm:$0xf]
    %v1023 = vld [vmem:[%s1009 + $0x34] sm:$0xf]
    %v1024 = vld [vmem:[%s1009 + $0x38] sm:$0xf]
    %v1025 = vld [vmem:[%s1009 + $0x3c] sm:$0xf]
    %v1026 = vunpack.c.l.b16 %v974
    %v1027 = vunpack.c.l.b16 %v984
    %v1028 = vunpack.c.l.b16 %v998
    %v1029 = vunpack.c.l.b16 %v1008
    %v1030 = vpack.c.b16 %v1027, %v1026
    %v1031 = vpack.c.b16 %v1029, %v1028
    %v1050 = vunpack.c.l.b16 %v1010
    %v1051 = vunpack.c.l.b16 %v1011
    %v1052 = vunpack.c.l.b16 %v1012
    %v1053 = vunpack.c.l.b16 %v1013
    %v1054 = vunpack.c.l.b16 %v1014
    %v1055 = vunpack.c.l.b16 %v1015
    %v1056 = vunpack.c.l.b16 %v1016
    %v1057 = vunpack.c.l.b16 %v1017
    %v1058 = vunpack.c.l.b16 %v1018
    %v1059 = vunpack.c.l.b16 %v1019
    %v1060 = vunpack.c.l.b16 %v1020
    %v1061 = vunpack.c.l.b16 %v1021
    %v1062 = vunpack.c.l.b16 %v1022
    %v1063 = vunpack.c.l.b16 %v1023
    %v1064 = vunpack.c.l.b16 %v1024
    %v1065 = vunpack.c.l.b16 %v1025
    %v1066 = vpack.c.b16 %v1051, %v1050
    %v1067 = vpack.c.b16 %v1053, %v1052
    %v1068 = vpack.c.b16 %v1055, %v1054
    %v1069 = vpack.c.b16 %v1057, %v1056
    %v1070 = vpack.c.b16 %v1059, %v1058
    %v1071 = vpack.c.b16 %v1061, %v1060
    %v1072 = vpack.c.b16 %v1063, %v1062
    %v1073 = vpack.c.b16 %v1065, %v1064
    %1082 = vmatprep.subr.bf16.mxu0 0
    %1083 = vmatpush1.bf16.msra.mxu0 %v1066
    %1084 = vmatprep.subr.bf16.mxu0 0
    %1085 = vmatpush1.bf16.msra.mxu0 %v1067
    %1086 = vmatprep.subr.bf16.mxu0 0
    %1087 = vmatpush1.bf16.msra.mxu0 %v1068
    %1088 = vmatprep.subr.bf16.mxu0 0
    %1089 = vmatpush1.bf16.msra.mxu0 %v1069
    %1090 = vmatprep.subr.bf16.mxu0 0
    %1091 = vmatpush1.bf16.msra.mxu0 %v1070
    %1092 = vmatprep.subr.bf16.mxu0 0
    %1093 = vmatpush1.bf16.msra.mxu0 %v1071
    %1094 = vmatprep.subr.bf16.mxu0 0
    %1095 = vmatpush1.bf16.msra.mxu0 %v1072
    %1096 = vmatprep.subr.bf16.mxu0 0
    %1097 = vmatpush1.bf16.msra.mxu0 %v1073
    %1098 = vmatprep.subr.bf16.mxu0 0
    %1099 = vmatpush1.bf16.msra.mxu0 0
    %1100 = vmatprep.subr.bf16.mxu0 0
    %1101 = vmatpush1.bf16.msra.mxu0 0
    %1102 = vmatprep.subr.bf16.mxu0 0
    %1103 = vmatpush1.bf16.msra.mxu0 0
    %1104 = vmatprep.subr.bf16.mxu0 0
    %1105 = vmatpush1.bf16.msra.mxu0 0
    %1106 = vmatprep.subr.bf16.mxu0 0
    %1107 = vmatpush1.bf16.msra.mxu0 0
    %1108 = vmatprep.subr.bf16.mxu0 0
    %1109 = vmatpush1.bf16.msra.mxu0 0
    %1110 = vmatprep.subr.bf16.mxu0 0
    %1111 = vmatpush1.bf16.msra.mxu0 0
    %1112 = vmatprep.subr.bf16.mxu0 0
    %1113 = vmatpush1.bf16.msra.mxu0 0
    %1114 = vmatprep.mubr.bf16.mxu0 0
    %1115 = vmatmul.mubr.bf16.gmra.mrb[0].mxu0 %v1030
    %v1116 = vpop.f32.mrb[0].mxu0
    %v1117 = vadd.f32 0.0, %v1116
    %v1118 = vpop.f32.mrb[0].mxu0
    %v1119 = vpop.f32.mrb[0].mxu0
    %v1120 = vadd.f32 0.0, %v1119
    %v1121 = vpop.f32.mrb[0].mxu0
    %1122 = vmatprep.mubr.bf16.mxu0 0
    %1123 = vmatmul.mubr.bf16.gmra.mrb[0].mxu0 %v1031
    %v1124 = vpop.f32.mrb[0].mxu0
    %v1125 = vadd.f32 0.0, %v1124
    %v1126 = vpop.f32.mrb[0].mxu0
    %v1127 = vpop.f32.mrb[0].mxu0
    %v1128 = vadd.f32 0.0, %v1127
    %v1129 = vpop.f32.mrb[0].mxu0
    %1130 = vdwg.mxu0
    %v1135 = vunpack.c.l.b16 %v939
    %v1136 = vunpack.c.l.b16 %v940
    %v1137 = vunpack.c.l.b16 %v941
    %v1138 = vunpack.c.l.b16 %v942
    %v1139 = vpack.c.b16 %v1136, %v1135
    %v1140 = vpack.c.b16 %v1138, %v1137
    %v1159 = vunpack.c.l.b16 %v943
    %v1160 = vunpack.c.l.b16 %v944
    %v1161 = vunpack.c.l.b16 %v945
    %v1162 = vunpack.c.l.b16 %v946
    %v1163 = vunpack.c.l.b16 %v947
    %v1164 = vunpack.c.l.b16 %v948
    %v1165 = vunpack.c.l.b16 %v949
    %v1166 = vunpack.c.l.b16 %v950
    %v1167 = vunpack.c.l.b16 %v951
    %v1168 = vunpack.c.l.b16 %v952
    %v1169 = vunpack.c.l.b16 %v953
    %v1170 = vunpack.c.l.b16 %v954
    %v1171 = vunpack.c.l.b16 %v955
    %v1172 = vunpack.c.l.b16 %v956
    %v1173 = vunpack.c.l.b16 %v957
    %v1174 = vunpack.c.l.b16 %v958
    %v1175 = vpack.c.b16 %v1160, %v1159
    %v1176 = vpack.c.b16 %v1162, %v1161
    %v1177 = vpack.c.b16 %v1164, %v1163
    %v1178 = vpack.c.b16 %v1166, %v1165
    %v1179 = vpack.c.b16 %v1168, %v1167
    %v1180 = vpack.c.b16 %v1170, %v1169
    %v1181 = vpack.c.b16 %v1172, %v1171
    %v1182 = vpack.c.b16 %v1174, %v1173
    %1191 = vmatprep.subr.bf16.mxu0 0
    %1192 = vmatpush1.bf16.msra.mxu0 %v1175
    %1193 = vmatprep.subr.bf16.mxu0 0
    %1194 = vmatpush1.bf16.msra.mxu0 %v1176
    %1195 = vmatprep.subr.bf16.mxu0 0
    %1196 = vmatpush1.bf16.msra.mxu0 %v1177
    %1197 = vmatprep.subr.bf16.mxu0 0
    %1198 = vmatpush1.bf16.msra.mxu0 %v1178
    %1199 = vmatprep.subr.bf16.mxu0 0
    %1200 = vmatpush1.bf16.msra.mxu0 %v1179
    %1201 = vmatprep.subr.bf16.mxu0 0
    %1202 = vmatpush1.bf16.msra.mxu0 %v1180
    %1203 = vmatprep.subr.bf16.mxu0 0
    %1204 = vmatpush1.bf16.msra.mxu0 %v1181
    %1205 = vmatprep.subr.bf16.mxu0 0
    %1206 = vmatpush1.bf16.msra.mxu0 %v1182
    %1207 = vmatprep.subr.bf16.mxu0 0
    %1208 = vmatpush1.bf16.msra.mxu0 0
    %1209 = vmatprep.subr.bf16.mxu0 0
    %1210 = vmatpush1.bf16.msra.mxu0 0
    %1211 = vmatprep.subr.bf16.mxu0 0
    %1212 = vmatpush1.bf16.msra.mxu0 0
    %1213 = vmatprep.subr.bf16.mxu0 0
    %1214 = vmatpush1.bf16.msra.mxu0 0
    %1215 = vmatprep.subr.bf16.mxu0 0
    %1216 = vmatpush1.bf16.msra.mxu0 0
    %1217 = vmatprep.subr.bf16.mxu0 0
    %1218 = vmatpush1.bf16.msra.mxu0 0
    %1219 = vmatprep.subr.bf16.mxu0 0
    %1220 = vmatpush1.bf16.msra.mxu0 0
    %1221 = vmatprep.subr.bf16.mxu0 0
    %1222 = vmatpush1.bf16.msra.mxu0 0
    %1223 = vmatprep.mubr.bf16.mxu0 0
    %1224 = vmatmul.mubr.bf16.gmra.mrb[0].mxu0 %v1139
    %v1225 = vpop.f32.mrb[0].mxu0
    %v1226 = vadd.f32 %v1117, %v1225
    %v1227 = vpop.f32.mrb[0].mxu0
    %v1228 = vpop.f32.mrb[0].mxu0
    %v1229 = vadd.f32 %v1120, %v1228
    %v1230 = vpop.f32.mrb[0].mxu0
    %1231 = vmatprep.mubr.bf16.mxu0 0
    %1232 = vmatmul.mubr.bf16.gmra.mrb[0].mxu0 %v1140
    %v1233 = vpop.f32.mrb[0].mxu0
    %v1234 = vadd.f32 %v1125, %v1233
    %v1235 = vpop.f32.mrb[0].mxu0
    %v1236 = vpop.f32.mrb[0].mxu0
    %v1237 = vadd.f32 %v1128, %v1236
    %v1238 = vpop.f32.mrb[0].mxu0
    %1239 = vdwg.mxu0
    %v1240 = vld [vmem:[#allocation3] sm:$0xe]
    %v1241 = vld [vmem:[#allocation3 + $0xc] sm:$0xe]
    %v1246 = vrot.slane %v1240, 5
    %v1247 = vrot.slane %v1246, 4
    %v1248 = vrot.slane %v940, 5
    %v1249 = vsel %vm402, %v1247, %v1248
    %v1250 = vrot.slane %v1248, 4
    %v1251 = vrot.slane %v959, 5
    %v1252 = vsel %vm402, %v1250, %v1251
    %v1253 = vrot.slane %v1241, 5
    %v1254 = vrot.slane %v1253, 4
    %v1255 = vrot.slane %v942, 5
    %v1256 = vsel %vm402, %v1254, %v1255
    %v1257 = vrot.slane %v1255, 4
    %v1258 = vrot.slane %v960, 5
    %v1259 = vsel %vm402, %v1257, %v1258
    %s1260 = scalar_lea.vmem [#allocation4], 128
    %v1261 = vld [vmem:[%s1260] sm:$0xf]
    %v1262 = vld [vmem:[%s1260 + $0x4] sm:$0xf]
    %v1263 = vld [vmem:[%s1260 + $0x8] sm:$0xf]
    %v1264 = vld [vmem:[%s1260 + $0xc] sm:$0xf]
    %v1265 = vld [vmem:[%s1260 + $0x10] sm:$0xf]
    %v1266 = vld [vmem:[%s1260 + $0x14] sm:$0xf]
    %v1267 = vld [vmem:[%s1260 + $0x18] sm:$0xf]
    %v1268 = vld [vmem:[%s1260 + $0x1c] sm:$0xf]
    %v1269 = vld [vmem:[%s1260 + $0x20] sm:$0xf]
    %v1270 = vld [vmem:[%s1260 + $0x24] sm:$0xf]
    %v1271 = vld [vmem:[%s1260 + $0x28] sm:$0xf]
    %v1272 = vld [vmem:[%s1260 + $0x2c] sm:$0xf]
    %v1273 = vld [vmem:[%s1260 + $0x30] sm:$0xf]
    %v1274 = vld [vmem:[%s1260 + $0x34] sm:$0xf]
    %v1275 = vld [vmem:[%s1260 + $0x38] sm:$0xf]
    %v1276 = vld [vmem:[%s1260 + $0x3c] sm:$0xf]
    %v1277 = vunpack.c.l.b16 %v1249
    %v1278 = vunpack.c.l.b16 %v1252
    %v1279 = vunpack.c.l.b16 %v1256
    %v1280 = vunpack.c.l.b16 %v1259
    %v1281 = vpack.c.b16 %v1278, %v1277
    %v1282 = vpack.c.b16 %v1280, %v1279
    %v1301 = vunpack.c.l.b16 %v1261
    %v1302 = vunpack.c.l.b16 %v1262
    %v1303 = vunpack.c.l.b16 %v1263
    %v1304 = vunpack.c.l.b16 %v1264
    %v1305 = vunpack.c.l.b16 %v1265
    %v1306 = vunpack.c.l.b16 %v1266
    %v1307 = vunpack.c.l.b16 %v1267
    %v1308 = vunpack.c.l.b16 %v1268
    %v1309 = vunpack.c.l.b16 %v1269
    %v1310 = vunpack.c.l.b16 %v1270
    %v1311 = vunpack.c.l.b16 %v1271
    %v1312 = vunpack.c.l.b16 %v1272
    %v1313 = vunpack.c.l.b16 %v1273
    %v1314 = vunpack.c.l.b16 %v1274
    %v1315 = vunpack.c.l.b16 %v1275
    %v1316 = vunpack.c.l.b16 %v1276
    %v1317 = vpack.c.b16 %v1302, %v1301
    %v1318 = vpack.c.b16 %v1304, %v1303
    %v1319 = vpack.c.b16 %v1306, %v1305
    %v1320 = vpack.c.b16 %v1308, %v1307
    %v1321 = vpack.c.b16 %v1310, %v1309
    %v1322 = vpack.c.b16 %v1312, %v1311
    %v1323 = vpack.c.b16 %v1314, %v1313
    %v1324 = vpack.c.b16 %v1316, %v1315
    %1333 = vmatprep.subr.bf16.mxu0 0
    %1334 = vmatpush1.bf16.msra.mxu0 %v1317
    %1335 = vmatprep.subr.bf16.mxu0 0
    %1336 = vmatpush1.bf16.msra.mxu0 %v1318
    %1337 = vmatprep.subr.bf16.mxu0 0
    %1338 = vmatpush1.bf16.msra.mxu0 %v1319
    %1339 = vmatprep.subr.bf16.mxu0 0
    %1340 = vmatpush1.bf16.msra.mxu0 %v1320
    %1341 = vmatprep.subr.bf16.mxu0 0
    %1342 = vmatpush1.bf16.msra.mxu0 %v1321
    %1343 = vmatprep.subr.bf16.mxu0 0
    %1344 = vmatpush1.bf16.msra.mxu0 %v1322
    %1345 = vmatprep.subr.bf16.mxu0 0
    %1346 = vmatpush1.bf16.msra.mxu0 %v1323
    %1347 = vmatprep.subr.bf16.mxu0 0
    %1348 = vmatpush1.bf16.msra.mxu0 %v1324
    %1349 = vmatprep.subr.bf16.mxu0 0
    %1350 = vmatpush1.bf16.msra.mxu0 0
    %1351 = vmatprep.subr.bf16.mxu0 0
    %1352 = vmatpush1.bf16.msra.mxu0 0
    %1353 = vmatprep.subr.bf16.mxu0 0
    %1354 = vmatpush1.bf16.msra.mxu0 0
    %1355 = vmatprep.subr.bf16.mxu0 0
    %1356 = vmatpush1.bf16.msra.mxu0 0
    %1357 = vmatprep.subr.bf16.mxu0 0
    %1358 = vmatpush1.bf16.msra.mxu0 0
    %1359 = vmatprep.subr.bf16.mxu0 0
    %1360 = vmatpush1.bf16.msra.mxu0 0
    %1361 = vmatprep.subr.bf16.mxu0 0
    %1362 = vmatpush1.bf16.msra.mxu0 0
    %1363 = vmatprep.subr.bf16.mxu0 0
    %1364 = vmatpush1.bf16.msra.mxu0 0
    %1365 = vmatprep.mubr.bf16.mxu0 0
    %1366 = vmatmul.mubr.bf16.gmra.mrb[0].mxu0 %v1281
    %v1367 = vpop.f32.mrb[0].mxu0
    %v1368 = vadd.f32 0.0, %v1367
    %v1369 = vpop.f32.mrb[0].mxu0
    %v1370 = vpop.f32.mrb[0].mxu0
    %v1371 = vadd.f32 0.0, %v1370
    %v1372 = vpop.f32.mrb[0].mxu0
    %1373 = vmatprep.mubr.bf16.mxu0 0
    %1374 = vmatmul.mubr.bf16.gmra.mrb[0].mxu0 %v1282
    %v1375 = vpop.f32.mrb[0].mxu0
    %v1376 = vadd.f32 0.0, %v1375
    %v1377 = vpop.f32.mrb[0].mxu0
    %v1378 = vpop.f32.mrb[0].mxu0
    %v1379 = vadd.f32 0.0, %v1378
    %v1380 = vpop.f32.mrb[0].mxu0
    %1381 = vdwg.mxu0
    %v1382 = vadd.f32 %v1226, %v1368
    %v1383 = vadd.f32 %v1229, %v1371
    %v1384 = vadd.f32 %v1234, %v1376
    %v1385 = vadd.f32 %v1237, %v1379
    %v1386 = vld [vmem:[%s5] sm:$0x1]
    %v1387 = vld [vmem:[%s6] sm:$0x1]
    %v1388 = vadd.f32 %v1382, %v1383
    %v1389 = vadd.f32 %v1388, %v1384
    %v1390 = vadd.f32 %v1389, %v1385
    %v1391 = vrot.slane %v1390, 4
    %v1392 = vadd.f32 %v1390, %v1391
    %v1393 = vrot.slane %v1392, 2
    %v1394 = vadd.f32 %v1392, %v1393
    %v1395 = vrot.slane %v1394, 1
    %v1396 = vadd.f32 %v1394, %v1395
    %v1397 = vmul.f32 %v1382, %v1382
    %v1398 = vmul.f32 %v1383, %v1383
    %v1399 = vmul.f32 %v1384, %v1384
    %v1400 = vmul.f32 %v1385, %v1385
    %v1401 = vadd.f32 %v1397, %v1398
    %v1402 = vadd.f32 %v1401, %v1399
    %v1403 = vadd.f32 %v1402, %v1400
    %v1404 = vrot.slane %v1403, 4
    %v1405 = vadd.f32 %v1403, %v1404
    %v1406 = vrot.slane %v1405, 2
    %v1407 = vadd.f32 %v1405, %v1406
    %v1408 = vrot.slane %v1407, 1
    %v1409 = vadd.f32 %v1407, %v1408
    %1410 = vmatprep.subr.mxu0 0.0
    %1411 = vmatpush1.msra.mxu0 %v48
    %1412 = vmatprep.subr.mxu0 0.0
    %1413 = vmatpush1.msra.mxu0 %v49
    %1414 = vmatprep.subr.mxu0 0.0
    %1415 = vmatpush1.msra.mxu0 %v50
    %1416 = vmatprep.subr.mxu0 0.0
    %1417 = vmatpush1.msra.mxu0 %v51
    %1418 = vmatprep.subr.mxu0 0.0
    %1419 = vmatpush1.msra.mxu0 %v52
    %1420 = vmatprep.subr.mxu0 0.0
    %1421 = vmatpush1.msra.mxu0 %v53
    %1422 = vmatprep.subr.mxu0 0.0
    %1423 = vmatpush1.msra.mxu0 %v54
    %1424 = vmatprep.subr.mxu0 0.0
    %1425 = vmatpush1.msra.mxu0 %v55
    %1426 = vmatprep.subr.mxu0 0.0
    %1427 = vmatpush1.msra.mxu0 %v56
    %1428 = vmatprep.subr.mxu0 0.0
    %1429 = vmatpush1.msra.mxu0 %v57
    %1430 = vmatprep.subr.mxu0 0.0
    %1431 = vmatpush1.msra.mxu0 %v58
    %1432 = vmatprep.subr.mxu0 0.0
    %1433 = vmatpush1.msra.mxu0 %v59
    %1434 = vmatprep.subr.mxu0 0.0
    %1435 = vmatpush1.msra.mxu0 %v60
    %1436 = vmatprep.subr.mxu0 0.0
    %1437 = vmatpush1.msra.mxu0 %v61
    %1438 = vmatprep.subr.mxu0 0.0
    %1439 = vmatpush1.msra.mxu0 %v62
    %1440 = vmatprep.subr.mxu0 0.0
    %1441 = vmatpush1.msra.mxu0 %v63
    %1442 = vmatprep.subr.mxu0 0.0
    %1443 = vmatpush1.msra.mxu0 0.0
    %1444 = vmatprep.subr.mxu0 0.0
    %1445 = vmatpush1.msra.mxu0 0.0
    %1446 = vmatprep.subr.mxu0 0.0
    %1447 = vmatpush1.msra.mxu0 0.0
    %1448 = vmatprep.subr.mxu0 0.0
    %1449 = vmatpush1.msra.mxu0 0.0
    %1450 = vmatprep.subr.mxu0 0.0
    %1451 = vmatpush1.msra.mxu0 0.0
    %1452 = vmatprep.subr.mxu0 0.0
    %1453 = vmatpush1.msra.mxu0 0.0
    %1454 = vmatprep.subr.mxu0 0.0
    %1455 = vmatpush1.msra.mxu0 0.0
    %1456 = vmatprep.subr.mxu0 0.0
    %1457 = vmatpush1.msra.mxu0 0.0
    %1458 = vmatprep.subr.mxu0 0.0
    %1459 = vmatpush1.msra.mxu0 0.0
    %1460 = vmatprep.subr.mxu0 0.0
    %1461 = vmatpush1.msra.mxu0 0.0
    %1462 = vmatprep.subr.mxu0 0.0
    %1463 = vmatpush1.msra.mxu0 0.0
    %1464 = vmatprep.subr.mxu0 0.0
    %1465 = vmatpush1.msra.mxu0 0.0
    %1466 = vmatprep.subr.mxu0 0.0
    %1467 = vmatpush1.msra.mxu0 0.0
    %1468 = vmatprep.subr.mxu0 0.0
    %1469 = vmatpush1.msra.mxu0 0.0
    %1470 = vmatprep.subr.mxu0 0.0
    %1471 = vmatpush1.msra.mxu0 0.0
    %1472 = vmatprep.subr.mxu0 0.0
    %1473 = vmatpush1.msra.mxu0 0.0
    %1474 = vmatprep.mubr.f32.mxu0 0.0
    %1475 = vmatmul.mubr.f32.gmra.mrb[0].mxu0 %v1396
    %v1476 = vpop.f32.mrb[0].mxu0
    %v1477 = vadd.f32 0.0, %v1476
    %v1478 = vpop.f32.mrb[0].mxu0
    %1479 = vdwg.mxu0
    %v1480 = vmul.f32 %v1477, 0.001953125
    %1481 = vmatprep.subr.mxu0 0.0
    %1482 = vmatpush1.msra.mxu0 %v48
    %1483 = vmatprep.subr.mxu0 0.0
    %1484 = vmatpush1.msra.mxu0 %v49
    %1485 = vmatprep.subr.mxu0 0.0
    %1486 = vmatpush1.msra.mxu0 %v50
    %1487 = vmatprep.subr.mxu0 0.0
    %1488 = vmatpush1.msra.mxu0 %v51
    %1489 = vmatprep.subr.mxu0 0.0
    %1490 = vmatpush1.msra.mxu0 %v52
    %1491 = vmatprep.subr.mxu0 0.0
    %1492 = vmatpush1.msra.mxu0 %v53
    %1493 = vmatprep.subr.mxu0 0.0
    %1494 = vmatpush1.msra.mxu0 %v54
    %1495 = vmatprep.subr.mxu0 0.0
    %1496 = vmatpush1.msra.mxu0 %v55
    %1497 = vmatprep.subr.mxu0 0.0
    %1498 = vmatpush1.msra.mxu0 %v56
    %1499 = vmatprep.subr.mxu0 0.0
    %1500 = vmatpush1.msra.mxu0 %v57
    %1501 = vmatprep.subr.mxu0 0.0
    %1502 = vmatpush1.msra.mxu0 %v58
    %1503 = vmatprep.subr.mxu0 0.0
    %1504 = vmatpush1.msra.mxu0 %v59
    %1505 = vmatprep.subr.mxu0 0.0
    %1506 = vmatpush1.msra.mxu0 %v60
    %1507 = vmatprep.subr.mxu0 0.0
    %1508 = vmatpush1.msra.mxu0 %v61
    %1509 = vmatprep.subr.mxu0 0.0
    %1510 = vmatpush1.msra.mxu0 %v62
    %1511 = vmatprep.subr.mxu0 0.0
    %1512 = vmatpush1.msra.mxu0 %v63
    %1513 = vmatprep.subr.mxu0 0.0
    %1514 = vmatpush1.msra.mxu0 0.0
    %1515 = vmatprep.subr.mxu0 0.0
    %1516 = vmatpush1.msra.mxu0 0.0
    %1517 = vmatprep.subr.mxu0 0.0
    %1518 = vmatpush1.msra.mxu0 0.0
    %1519 = vmatprep.subr.mxu0 0.0
    %1520 = vmatpush1.msra.mxu0 0.0
    %1521 = vmatprep.subr.mxu0 0.0
    %1522 = vmatpush1.msra.mxu0 0.0
    %1523 = vmatprep.subr.mxu0 0.0
    %1524 = vmatpush1.msra.mxu0 0.0
    %1525 = vmatprep.subr.mxu0 0.0
    %1526 = vmatpush1.msra.mxu0 0.0
    %1527 = vmatprep.subr.mxu0 0.0
    %1528 = vmatpush1.msra.mxu0 0.0
    %1529 = vmatprep.subr.mxu0 0.0
    %1530 = vmatpush1.msra.mxu0 0.0
    %1531 = vmatprep.subr.mxu0 0.0
    %1532 = vmatpush1.msra.mxu0 0.0
    %1533 = vmatprep.subr.mxu0 0.0
    %1534 = vmatpush1.msra.mxu0 0.0
    %1535 = vmatprep.subr.mxu0 0.0
    %1536 = vmatpush1.msra.mxu0 0.0
    %1537 = vmatprep.subr.mxu0 0.0
    %1538 = vmatpush1.msra.mxu0 0.0
    %1539 = vmatprep.subr.mxu0 0.0
    %1540 = vmatpush1.msra.mxu0 0.0
    %1541 = vmatprep.subr.mxu0 0.0
    %1542 = vmatpush1.msra.mxu0 0.0
    %1543 = vmatprep.subr.mxu0 0.0
    %1544 = vmatpush1.msra.mxu0 0.0
    %1545 = vmatprep.mubr.f32.mxu0 0.0
    %1546 = vmatmul.mubr.f32.gmra.mrb[0].mxu0 %v1409
    %v1547 = vpop.f32.mrb[0].mxu0
    %v1548 = vadd.f32 0.0, %v1547
    %v1549 = vpop.f32.mrb[0].mxu0
    %1550 = vdwg.mxu0
    %v1551 = vmul.f32 %v1548, 0.001953125
    %v1552 = vmul.f32 %v1480, %v1480
    %v1553 = vsub.f32 %v1551, %v1552
    %v1554 = vmax.f32 %v1553, 0.0
    %v1555 = vadd.f32 %v1554, 1e-05
    %v1556 = vrsqrt.pop %v1555
    %v1557 = vmul.f32 %v1556, %v1386
    %v1558 = vmul.f32 %v1480, %v1557
    %v1559 = vsub.f32 %v1387, %v1558
    %v1561 = vsel %vm689, %v1557, 0
    %1563 = vmatprep.subr.mxu0 0.0
    %1564 = vmatpush1.msra.mxu0 %v64
    %1565 = vmatprep.subr.mxu0 0.0
    %1566 = vmatpush1.msra.mxu0 0.0
    %1567 = vmatprep.subr.mxu0 0.0
    %1568 = vmatpush1.msra.mxu0 0.0
    %1569 = vmatprep.subr.mxu0 0.0
    %1570 = vmatpush1.msra.mxu0 0.0
    %1571 = vmatprep.subr.mxu0 0.0
    %1572 = vmatpush1.msra.mxu0 0.0
    %1573 = vmatprep.subr.mxu0 0.0
    %1574 = vmatpush1.msra.mxu0 0.0
    %1575 = vmatprep.subr.mxu0 0.0
    %1576 = vmatpush1.msra.mxu0 0.0
    %1577 = vmatprep.subr.mxu0 0.0
    %1578 = vmatpush1.msra.mxu0 0.0
    %1579 = vmatprep.subr.mxu0 0.0
    %1580 = vmatpush1.msra.mxu0 0.0
    %1581 = vmatprep.subr.mxu0 0.0
    %1582 = vmatpush1.msra.mxu0 0.0
    %1583 = vmatprep.subr.mxu0 0.0
    %1584 = vmatpush1.msra.mxu0 0.0
    %1585 = vmatprep.subr.mxu0 0.0
    %1586 = vmatpush1.msra.mxu0 0.0
    %1587 = vmatprep.subr.mxu0 0.0
    %1588 = vmatpush1.msra.mxu0 0.0
    %1589 = vmatprep.subr.mxu0 0.0
    %1590 = vmatpush1.msra.mxu0 0.0
    %1591 = vmatprep.subr.mxu0 0.0
    %1592 = vmatpush1.msra.mxu0 0.0
    %1593 = vmatprep.subr.mxu0 0.0
    %1594 = vmatpush1.msra.mxu0 0.0
    %1595 = vmatprep.subr.mxu0 0.0
    %1596 = vmatpush1.msra.mxu0 0.0
    %1597 = vmatprep.subr.mxu0 0.0
    %1598 = vmatpush1.msra.mxu0 0.0
    %1599 = vmatprep.subr.mxu0 0.0
    %1600 = vmatpush1.msra.mxu0 0.0
    %1601 = vmatprep.subr.mxu0 0.0
    %1602 = vmatpush1.msra.mxu0 0.0
    %1603 = vmatprep.subr.mxu0 0.0
    %1604 = vmatpush1.msra.mxu0 0.0
    %1605 = vmatprep.subr.mxu0 0.0
    %1606 = vmatpush1.msra.mxu0 0.0
    %1607 = vmatprep.subr.mxu0 0.0
    %1608 = vmatpush1.msra.mxu0 0.0
    %1609 = vmatprep.subr.mxu0 0.0
    %1610 = vmatpush1.msra.mxu0 0.0
    %1611 = vmatprep.subr.mxu0 0.0
    %1612 = vmatpush1.msra.mxu0 0.0
    %1613 = vmatprep.subr.mxu0 0.0
    %1614 = vmatpush1.msra.mxu0 0.0
    %1615 = vmatprep.subr.mxu0 0.0
    %1616 = vmatpush1.msra.mxu0 0.0
    %1617 = vmatprep.subr.mxu0 0.0
    %1618 = vmatpush1.msra.mxu0 0.0
    %1619 = vmatprep.subr.mxu0 0.0
    %1620 = vmatpush1.msra.mxu0 0.0
    %1621 = vmatprep.subr.mxu0 0.0
    %1622 = vmatpush1.msra.mxu0 0.0
    %1623 = vmatprep.subr.mxu0 0.0
    %1624 = vmatpush1.msra.mxu0 0.0
    %1625 = vmatprep.subr.mxu0 0.0
    %1626 = vmatpush1.msra.mxu0 0.0
    %1627 = vmatprep.mubr.f32.mxu0 0.0
    %1628 = vmatmul.mubr.f32.gmra.mrb[0].mxu0 %v1561
    %v1629 = vpop.f32.mrb[0].mxu0
    %v1630 = vadd.f32 0.0, %v1629
    %v1631 = vpop.f32.mrb[0].mxu0
    %1632 = vdwg.mxu0
    %v1634 = vsel %vm689, %v1559, 0
    %1636 = vmatprep.subr.mxu0 0.0
    %1637 = vmatpush1.msra.mxu0 %v64
    %1638 = vmatprep.subr.mxu0 0.0
    %1639 = vmatpush1.msra.mxu0 0.0
    %1640 = vmatprep.subr.mxu0 0.0
    %1641 = vmatpush1.msra.mxu0 0.0
    %1642 = vmatprep.subr.mxu0 0.0
    %1643 = vmatpush1.msra.mxu0 0.0
    %1644 = vmatprep.subr.mxu0 0.0
    %1645 = vmatpush1.msra.mxu0 0.0
    %1646 = vmatprep.subr.mxu0 0.0
    %1647 = vmatpush1.msra.mxu0 0.0
    %1648 = vmatprep.subr.mxu0 0.0
    %1649 = vmatpush1.msra.mxu0 0.0
    %1650 = vmatprep.subr.mxu0 0.0
    %1651 = vmatpush1.msra.mxu0 0.0
    %1652 = vmatprep.subr.mxu0 0.0
    %1653 = vmatpush1.msra.mxu0 0.0
    %1654 = vmatprep.subr.mxu0 0.0
    %1655 = vmatpush1.msra.mxu0 0.0
    %1656 = vmatprep.subr.mxu0 0.0
    %1657 = vmatpush1.msra.mxu0 0.0
    %1658 = vmatprep.subr.mxu0 0.0
    %1659 = vmatpush1.msra.mxu0 0.0
    %1660 = vmatprep.subr.mxu0 0.0
    %1661 = vmatpush1.msra.mxu0 0.0
    %1662 = vmatprep.subr.mxu0 0.0
    %1663 = vmatpush1.msra.mxu0 0.0
    %1664 = vmatprep.subr.mxu0 0.0
    %1665 = vmatpush1.msra.mxu0 0.0
    %1666 = vmatprep.subr.mxu0 0.0
    %1667 = vmatpush1.msra.mxu0 0.0
    %1668 = vmatprep.subr.mxu0 0.0
    %1669 = vmatpush1.msra.mxu0 0.0
    %1670 = vmatprep.subr.mxu0 0.0
    %1671 = vmatpush1.msra.mxu0 0.0
    %1672 = vmatprep.subr.mxu0 0.0
    %1673 = vmatpush1.msra.mxu0 0.0
    %1674 = vmatprep.subr.mxu0 0.0
    %1675 = vmatpush1.msra.mxu0 0.0
    %1676 = vmatprep.subr.mxu0 0.0
    %1677 = vmatpush1.msra.mxu0 0.0
    %1678 = vmatprep.subr.mxu0 0.0
    %1679 = vmatpush1.msra.mxu0 0.0
    %1680 = vmatprep.subr.mxu0 0.0
    %1681 = vmatpush1.msra.mxu0 0.0
    %1682 = vmatprep.subr.mxu0 0.0
    %1683 = vmatpush1.msra.mxu0 0.0
    %1684 = vmatprep.subr.mxu0 0.0
    %1685 = vmatpush1.msra.mxu0 0.0
    %1686 = vmatprep.subr.mxu0 0.0
    %1687 = vmatpush1.msra.mxu0 0.0
    %1688 = vmatprep.subr.mxu0 0.0
    %1689 = vmatpush1.msra.mxu0 0.0
    %1690 = vmatprep.subr.mxu0 0.0
    %1691 = vmatpush1.msra.mxu0 0.0
    %1692 = vmatprep.subr.mxu0 0.0
    %1693 = vmatpush1.msra.mxu0 0.0
    %1694 = vmatprep.subr.mxu0 0.0
    %1695 = vmatpush1.msra.mxu0 0.0
    %1696 = vmatprep.subr.mxu0 0.0
    %1697 = vmatpush1.msra.mxu0 0.0
    %1698 = vmatprep.subr.mxu0 0.0
    %1699 = vmatpush1.msra.mxu0 0.0
    %1700 = vmatprep.mubr.f32.mxu0 0.0
    %1701 = vmatmul.mubr.f32.gmra.mrb[0].mxu0 %v1634
    %v1702 = vpop.f32.mrb[0].mxu0
    %v1703 = vadd.f32 0.0, %v1702
    %v1704 = vpop.f32.mrb[0].mxu0
    %1705 = vdwg.mxu0
    %v1706 = vlaneseq
    %v1707 = vshrl.u32 %v1706, 7
    %v1708 = vsub.s32 0, %v1707
    %v1709 = vrot.slane %v1630, %v1708
    %v1710 = vmul.f32 %v1382, %v1709
    %v1711 = vmul.f32 %v1383, %v1709
    %v1712 = vmul.f32 %v1384, %v1709
    %v1713 = vmul.f32 %v1385, %v1709
    %v1714 = vlaneseq
    %v1715 = vshrl.u32 %v1714, 7
    %v1716 = vsub.s32 0, %v1715
    %v1717 = vrot.slane %v1703, %v1716
    %v1718 = vadd.f32 %v1710, %v1717
    %v1719 = vadd.f32 %v1711, %v1717
    %v1720 = vadd.f32 %v1712, %v1717
    %v1721 = vadd.f32 %v1713, %v1717
    %v1722 = vmax.f32 %v1718, 0.0
    %v1723 = vmax.f32 %v1719, 0.0
    %v1724 = vmax.f32 %v1720, 0.0
    %v1725 = vmax.f32 %v1721, 0.0
    %1726 = vst [vmem:[#allocation7] sm:$0xff] %v1722
    %1727 = vst [vmem:[#allocation7 + $0x8] sm:$0xff] %v1723
    %1728 = vst [vmem:[#allocation7 + $0x10] sm:$0xff] %v1724
    %1729 = vst [vmem:[#allocation7 + $0x18] sm:$0xff] %v1725
    // Predicated region
    $region42: #{tpu_custom_call.1} parent=1 // pred_check
      _
    $region43: #{tpu_custom_call.1} parent=1 // pred_check_branch
      %1731 = sbr.rel (0) target = $region45
    $region44: #{tpu_custom_call.1} parent=1 // pred_region
      %s1733 = ssub.s32 512, 512
      %1734 = vsyncadd [#allocation6], %s1733
      %s1735 = sshll.u32 [#allocation7], 4
      %s1736 = int_to_ptr.vmem [resolvable:$true] %s1735
      %1741 = dma.vmem_to_hbm [thread:$0]  %s1736, 512, %s9, [#allocation6], 128, 128, 8
    $region45: #{tpu_custom_call.1} parent=1 // pred_fallthru
      _
    // Predicated region
    $region46: #{tpu_custom_call.1} parent=1 // pred_check
      _
    $region47: #{tpu_custom_call.1} parent=1 // pred_check_branch
      %1743 = sbr.rel (0) target = $region49
    $region48: #{tpu_custom_call.1} parent=1 // pred_region
      %1744 = dma.done [#allocation6], 512
    $region49: #{tpu_custom_call.1} parent=1 // pred_fallthru
      _
    %1745 = vsyncpa [#allocation5], 1
    %1746 = vsyncpa [#allocation6], 1

</llo_original>
